<compile_context>
chip_gen: v5e
topology: v5e:2x2
jax: 0.10.0
libtpu: 0.0.40
codegen_flags: <defaults>
</compile_context>

<pallas_src>
import numpy as np
import jax
import jax.numpy as jnp
from jax.experimental import pallas as pl
from jax.experimental.pallas import tpu as pltpu


# ----------------------------------------------------------------------------
# Fused Split/Gaussianize kernel
# ----------------------------------------------------------------------------
def make_split_kernel(Ch, H, W):
    """Ch = n_channels // 2 (conv input channels), H/W = spatial dims."""

    def kernel(w_m_ref, w_s_ref, b_m_ref, b_s_ref,   # SMEM scalar params
               x1p_ref, x2_ref,                      # VMEM activations
               z2_ref, ldj_ref):                     # VMEM outputs
        bb = x2_ref.shape[0]                         # batch rows in this block
        ldj = jnp.zeros((bb, 1), jnp.float32)

        for co in range(Ch):                         # output channel (m, logs pair)
            m_acc = jnp.zeros((bb, H, W), jnp.float32)
            s_acc = jnp.zeros((bb, H, W), jnp.float32)
            for ci in range(Ch):                     # input channel
                # padded input plane for this channel: (bb, H+2, W+2)
                plane = x1p_ref[:, ci]
                base = (co * Ch + ci) * 9
                for dy in range(3):
                    for dx in range(3):
                        k = base + dy * 3 + dx
                        tap = plane[:, dy:dy + H, dx:dx + W]   # (bb, H, W)
                        m_acc = m_acc + w_m_ref[k] * tap
                        s_acc = s_acc + w_s_ref[k] * tap
            m = m_acc + b_m_ref[co]
            logs = s_acc + b_s_ref[co]

            # Gaussianize: z2 = (x2 - m) * exp(-logs)
            z2_ref[:, co] = (x2_ref[:, co] - m) * jnp.exp(-logs)

            # log-det contribution: -sum_{h,w} logs  (per batch row)
            row = jnp.sum(logs, axis=2)                          # (bb, H)
            ldj = ldj - jnp.sum(row, axis=1, keepdims=True)      # (bb, 1)

        ldj_ref[...] = ldj

    return kernel


# ----------------------------------------------------------------------------
# Wrapper: parameter prep + single pallas_call
# ----------------------------------------------------------------------------
def split_forward(x, conv_w, conv_b, log_scale_factor):
    """Forward of `Split`: returns (x1, z2, logdet) exactly like the module."""
    B, C, H, W = x.shape
    Ch = C // 2

    # chunk along channels (x1 is returned unchanged, pure slice)
    x1 = x[:, :Ch]
    x2 = x[:, Ch:]
    # halo-pad x1 once for the 3x3 'same' conv (layout plumbing, ~2 KiB here)
    x1p = jnp.pad(x1, ((0, 0), (0, 0), (1, 1), (1, 1)))

    # Fold exp(log_scale_factor) (a per-output-channel constant) into the conv
    # weight & bias, and split even/odd output channels (m vs logs) so the
    # kernel never has to do a strided channel slice.
    scale = jnp.exp(log_scale_factor.reshape(2 * Ch))
    w_eff = conv_w * scale[:, None, None, None]
    b_eff = conv_b * scale
    w_m = w_eff[0::2].reshape(-1)    # (Ch*Ch*9,)  even out-channels -> m
    w_s = w_eff[1::2].reshape(-1)    # (Ch*Ch*9,)  odd  out-channels -> logs
    b_m = b_eff[0::2]                # (Ch,)
    b_s = b_eff[1::2]                # (Ch,)

    # batch tile: whole batch at these toy sizes; multiple tiles (pipelined /
    # megacore-parallel) when the batch grows.
    bb = B
    for cand in (64, 32, 16, 8):
        if B % cand == 0:
            bb = cand
            break
    grid = (B // bb,)

    smem = pl.BlockSpec(memory_space=pltpu.MemorySpace.SMEM)
    kernel = make_split_kernel(Ch, H, W)

    z2, ldj = pl.pallas_call(
        kernel,
        grid=grid,
        in_specs=[
            smem, smem, smem, smem,                                   # weights/bias
            pl.BlockSpec((bb, Ch, H + 2, W + 2), lambda i: (i, 0, 0, 0)),  # x1 padded
            pl.BlockSpec((bb, Ch, H, W), lambda i: (i, 0, 0, 0)),          # x2
        ],
        out_specs=(
            pl.BlockSpec((bb, Ch, H, W), lambda i: (i, 0, 0, 0)),          # z2
            pl.BlockSpec((bb, 1), lambda i: (i, 0)),                       # logdet
        ),
        out_shape=(
            jax.ShapeDtypeStruct((B, Ch, H, W), jnp.float32),
            jax.ShapeDtypeStruct((B, 1), jnp.float32),
        ),
        compiler_params=pltpu.CompilerParams(
            dimension_semantics=("parallel",)),
    )(w_m, w_s, b_m, b_s, x1p, x2)

    return x1, z2, ldj[:, 0]


# ----------------------------------------------------------------------------
# Pure-JAX reference (for correctness verification)
# ----------------------------------------------------------------------------
def reference_forward(x, conv_w, conv_b, log_scale_factor):
    Ch = x.shape[1] // 2
    x1, x2 = x[:, :Ch], x[:, Ch:]
    h = jax.lax.conv_general_dilated(
        x1, conv_w, window_strides=(1, 1), padding=((1, 1), (1, 1)),
        dimension_numbers=('NCHW', 'OIHW', 'NCHW'),
        precision=jax.lax.Precision.HIGHEST)
    h = (h + conv_b[None, :, None, None]) * jnp.exp(log_scale_factor)[None]
    m, logs = h[:, 0::2], h[:, 1::2]
    z2 = (x2 - m) * jnp.exp(-logs)
    logdet = -jnp.sum(logs, axis=(1, 2, 3))
    return x1, z2, logdet


# ----------------------------------------------------------------------------
# Main
# ----------------------------------------------------------------------------
if __name__ == "__main__":
    B, C, H, W = 2, 4, 16, 16
    Ch = C // 2

    key = jax.random.PRNGKey(0)
    kx, kw, kb, kl = jax.random.split(key, 4)
    x = jax.random.normal(kx, (B, C, H, W), dtype=jnp.float32)
    # NB: the PyTorch module zero-initialises the conv and log_scale_factor
    # (identity Gaussianization); small random parameters are used here so the
    # conv / scaling path is actually exercised and verifiable.
    conv_w = 0.1 * jax.random.normal(kw, (2 * Ch, Ch, 3, 3), dtype=jnp.float32)
    conv_b = 0.1 * jax.random.normal(kb, (2 * Ch,), dtype=jnp.float32)
    lsf = 0.1 * jax.random.normal(kl, (2 * Ch, 1, 1), dtype=jnp.float32)

    fwd = jax.jit(split_forward)
    x1, z2, logdet = jax.block_until_ready(fwd(x, conv_w, conv_b, lsf))

    # shape checks (module returns (x1, z2, logdet-per-batch))
    assert x1.shape == (B, Ch, H, W)
    assert z2.shape == (B, Ch, H, W)
    assert logdet.shape == (B,)

    # correctness vs pure-JAX reference
    r_x1, r_z2, r_logdet = reference_forward(x, conv_w, conv_b, lsf)
    assert np.allclose(np.asarray(x1), np.asarray(r_x1), rtol=1e-4, atol=1e-4)
    assert np.allclose(np.asarray(z2), np.asarray(r_z2), rtol=1e-4, atol=1e-4)
    assert np.allclose(np.asarray(logdet), np.asarray(r_logdet),
                       rtol=1e-4, atol=1e-3)
    assert np.all(np.isfinite(np.asarray(z2)))
    assert np.all(np.isfinite(np.asarray(logdet)))

    print("KERNEL_OK")
</pallas_src>

<mosaic_0001>
module attributes {stable_mosaic.version = 11 : i64} {
  func.func @kernel(%arg0: i32, %arg1: memref<36xf32, #tpu.memory_space<smem>>, %arg2: memref<36xf32, #tpu.memory_space<smem>>, %arg3: memref<2xf32, #tpu.memory_space<smem>>, %arg4: memref<2xf32, #tpu.memory_space<smem>>, %arg5: memref<2x2x18x18xf32, #tpu.memory_space<vmem>>, %arg6: memref<2x2x16x16xf32, #tpu.memory_space<vmem>>, %arg7: memref<2x2x16x16xf32, #tpu.memory_space<vmem>>, %arg8: memref<2x1xf32, #tpu.memory_space<vmem>>) attributes {dimension_semantics = [#tpu.dimension_semantics<parallel>], iteration_bounds = array<i64: 1>, scalar_prefetch = 0 : i64, scratch_operands = 0 : i64, tpu.core_type = #tpu.core_type<tc>, window_params = [{transform_indices = @transform_0, window_bounds = array<i64: 36>}, {transform_indices = @transform_1, window_bounds = array<i64: 36>}, {transform_indices = @transform_2, window_bounds = array<i64: 2>}, {transform_indices = @transform_3, window_bounds = array<i64: 2>}, {transform_indices = @transform_4, window_bounds = array<i64: 2, 2, 18, 18>}, {transform_indices = @transform_5, window_bounds = array<i64: 2, 2, 16, 16>}, {transform_indices = @transform_6, window_bounds = array<i64: 2, 2, 16, 16>}, {transform_indices = @transform_7, window_bounds = array<i64: 2, 1>}]} {
    %cst = arith.constant 0.000000e+00 : f32
    %0 = vector.broadcast %cst : f32 to vector<2x1xf32>
    %cst_0 = arith.constant 0.000000e+00 : f32
    %1 = vector.broadcast %cst_0 : f32 to vector<2x16x16xf32>
    %cst_1 = arith.constant 0.000000e+00 : f32
    %2 = vector.broadcast %cst_1 : f32 to vector<2x16x16xf32>
    %c0 = arith.constant 0 : index
    %c0_2 = arith.constant 0 : index
    %c0_3 = arith.constant 0 : index
    %c0_4 = arith.constant 0 : index
    %3 = vector.load %arg5[%c0, %c0_2, %c0_3, %c0_4] : memref<2x2x18x18xf32, #tpu.memory_space<vmem>>, vector<2x1x18x18xf32>
    %4 = vector.shape_cast %3 : vector<2x1x18x18xf32> to vector<2x18x18xf32>
    %5 = vector.extract_strided_slice %4 {offsets = [0, 0, 0], sizes = [2, 16, 16], strides = [1, 1, 1]} : vector<2x18x18xf32> to vector<2x16x16xf32>
    %c0_5 = arith.constant 0 : index
    %6 = memref.load %arg1[%c0_5] : memref<36xf32, #tpu.memory_space<smem>>
    %7 = vector.broadcast %6 : f32 to vector<2x16x16xf32>
    %8 = arith.mulf %7, %5 : vector<2x16x16xf32>
    %9 = arith.addf %1, %8 : vector<2x16x16xf32>
    %c0_6 = arith.constant 0 : index
    %10 = memref.load %arg2[%c0_6] : memref<36xf32, #tpu.memory_space<smem>>
    %11 = vector.broadcast %10 : f32 to vector<2x16x16xf32>
    %12 = arith.mulf %11, %5 : vector<2x16x16xf32>
    %13 = arith.addf %2, %12 : vector<2x16x16xf32>
    %14 = vector.extract_strided_slice %4 {offsets = [0, 0, 1], sizes = [2, 16, 16], strides = [1, 1, 1]} : vector<2x18x18xf32> to vector<2x16x16xf32>
    %c1 = arith.constant 1 : index
    %15 = memref.load %arg1[%c1] : memref<36xf32, #tpu.memory_space<smem>>
    %16 = vector.broadcast %15 : f32 to vector<2x16x16xf32>
    %17 = arith.mulf %16, %14 : vector<2x16x16xf32>
    %18 = arith.addf %9, %17 : vector<2x16x16xf32>
    %c1_7 = arith.constant 1 : index
    %19 = memref.load %arg2[%c1_7] : memref<36xf32, #tpu.memory_space<smem>>
    %20 = vector.broadcast %19 : f32 to vector<2x16x16xf32>
    %21 = arith.mulf %20, %14 : vector<2x16x16xf32>
    %22 = arith.addf %13, %21 : vector<2x16x16xf32>
    %23 = vector.extract_strided_slice %4 {offsets = [0, 0, 2], sizes = [2, 16, 16], strides = [1, 1, 1]} : vector<2x18x18xf32> to vector<2x16x16xf32>
    %c2 = arith.constant 2 : index
    %24 = memref.load %arg1[%c2] : memref<36xf32, #tpu.memory_space<smem>>
    %25 = vector.broadcast %24 : f32 to vector<2x16x16xf32>
    %26 = arith.mulf %25, %23 : vector<2x16x16xf32>
    %27 = arith.addf %18, %26 : vector<2x16x16xf32>
    %c2_8 = arith.constant 2 : index
    %28 = memref.load %arg2[%c2_8] : memref<36xf32, #tpu.memory_space<smem>>
    %29 = vector.broadcast %28 : f32 to vector<2x16x16xf32>
    %30 = arith.mulf %29, %23 : vector<2x16x16xf32>
    %31 = arith.addf %22, %30 : vector<2x16x16xf32>
    %32 = vector.extract_strided_slice %4 {offsets = [0, 1, 0], sizes = [2, 16, 16], strides = [1, 1, 1]} : vector<2x18x18xf32> to vector<2x16x16xf32>
    %c3 = arith.constant 3 : index
    %33 = memref.load %arg1[%c3] : memref<36xf32, #tpu.memory_space<smem>>
    %34 = vector.broadcast %33 : f32 to vector<2x16x16xf32>
    %35 = arith.mulf %34, %32 : vector<2x16x16xf32>
    %36 = arith.addf %27, %35 : vector<2x16x16xf32>
    %c3_9 = arith.constant 3 : index
    %37 = memref.load %arg2[%c3_9] : memref<36xf32, #tpu.memory_space<smem>>
    %38 = vector.broadcast %37 : f32 to vector<2x16x16xf32>
    %39 = arith.mulf %38, %32 : vector<2x16x16xf32>
    %40 = arith.addf %31, %39 : vector<2x16x16xf32>
    %41 = vector.extract_strided_slice %4 {offsets = [0, 1, 1], sizes = [2, 16, 16], strides = [1, 1, 1]} : vector<2x18x18xf32> to vector<2x16x16xf32>
    %c4 = arith.constant 4 : index
    %42 = memref.load %arg1[%c4] : memref<36xf32, #tpu.memory_space<smem>>
    %43 = vector.broadcast %42 : f32 to vector<2x16x16xf32>
    %44 = arith.mulf %43, %41 : vector<2x16x16xf32>
    %45 = arith.addf %36, %44 : vector<2x16x16xf32>
    %c4_10 = arith.constant 4 : index
    %46 = memref.load %arg2[%c4_10] : memref<36xf32, #tpu.memory_space<smem>>
    %47 = vector.broadcast %46 : f32 to vector<2x16x16xf32>
    %48 = arith.mulf %47, %41 : vector<2x16x16xf32>
    %49 = arith.addf %40, %48 : vector<2x16x16xf32>
    %50 = vector.extract_strided_slice %4 {offsets = [0, 1, 2], sizes = [2, 16, 16], strides = [1, 1, 1]} : vector<2x18x18xf32> to vector<2x16x16xf32>
    %c5 = arith.constant 5 : index
    %51 = memref.load %arg1[%c5] : memref<36xf32, #tpu.memory_space<smem>>
    %52 = vector.broadcast %51 : f32 to vector<2x16x16xf32>
    %53 = arith.mulf %52, %50 : vector<2x16x16xf32>
    %54 = arith.addf %45, %53 : vector<2x16x16xf32>
    %c5_11 = arith.constant 5 : index
    %55 = memref.load %arg2[%c5_11] : memref<36xf32, #tpu.memory_space<smem>>
    %56 = vector.broadcast %55 : f32 to vector<2x16x16xf32>
    %57 = arith.mulf %56, %50 : vector<2x16x16xf32>
    %58 = arith.addf %49, %57 : vector<2x16x16xf32>
    %59 = vector.extract_strided_slice %4 {offsets = [0, 2, 0], sizes = [2, 16, 16], strides = [1, 1, 1]} : vector<2x18x18xf32> to vector<2x16x16xf32>
    %c6 = arith.constant 6 : index
    %60 = memref.load %arg1[%c6] : memref<36xf32, #tpu.memory_space<smem>>
    %61 = vector.broadcast %60 : f32 to vector<2x16x16xf32>
    %62 = arith.mulf %61, %59 : vector<2x16x16xf32>
    %63 = arith.addf %54, %62 : vector<2x16x16xf32>
    %c6_12 = arith.constant 6 : index
    %64 = memref.load %arg2[%c6_12] : memref<36xf32, #tpu.memory_space<smem>>
    %65 = vector.broadcast %64 : f32 to vector<2x16x16xf32>
    %66 = arith.mulf %65, %59 : vector<2x16x16xf32>
    %67 = arith.addf %58, %66 : vector<2x16x16xf32>
    %68 = vector.extract_strided_slice %4 {offsets = [0, 2, 1], sizes = [2, 16, 16], strides = [1, 1, 1]} : vector<2x18x18xf32> to vector<2x16x16xf32>
    %c7 = arith.constant 7 : index
    %69 = memref.load %arg1[%c7] : memref<36xf32, #tpu.memory_space<smem>>
    %70 = vector.broadcast %69 : f32 to vector<2x16x16xf32>
    %71 = arith.mulf %70, %68 : vector<2x16x16xf32>
    %72 = arith.addf %63, %71 : vector<2x16x16xf32>
    %c7_13 = arith.constant 7 : index
    %73 = memref.load %arg2[%c7_13] : memref<36xf32, #tpu.memory_space<smem>>
    %74 = vector.broadcast %73 : f32 to vector<2x16x16xf32>
    %75 = arith.mulf %74, %68 : vector<2x16x16xf32>
    %76 = arith.addf %67, %75 : vector<2x16x16xf32>
    %77 = vector.extract_strided_slice %4 {offsets = [0, 2, 2], sizes = [2, 16, 16], strides = [1, 1, 1]} : vector<2x18x18xf32> to vector<2x16x16xf32>
    %c8 = arith.constant 8 : index
    %78 = memref.load %arg1[%c8] : memref<36xf32, #tpu.memory_space<smem>>
    %79 = vector.broadcast %78 : f32 to vector<2x16x16xf32>
    %80 = arith.mulf %79, %77 : vector<2x16x16xf32>
    %81 = arith.addf %72, %80 : vector<2x16x16xf32>
    %c8_14 = arith.constant 8 : index
    %82 = memref.load %arg2[%c8_14] : memref<36xf32, #tpu.memory_space<smem>>
    %83 = vector.broadcast %82 : f32 to vector<2x16x16xf32>
    %84 = arith.mulf %83, %77 : vector<2x16x16xf32>
    %85 = arith.addf %76, %84 : vector<2x16x16xf32>
    %c0_15 = arith.constant 0 : index
    %c1_16 = arith.constant 1 : index
    %c0_17 = arith.constant 0 : index
    %c0_18 = arith.constant 0 : index
    %86 = vector.load %arg5[%c0_15, %c1_16, %c0_17, %c0_18] : memref<2x2x18x18xf32, #tpu.memory_space<vmem>>, vector<2x1x18x18xf32>
    %87 = vector.shape_cast %86 : vector<2x1x18x18xf32> to vector<2x18x18xf32>
    %88 = vector.extract_strided_slice %87 {offsets = [0, 0, 0], sizes = [2, 16, 16], strides = [1, 1, 1]} : vector<2x18x18xf32> to vector<2x16x16xf32>
    %c9 = arith.constant 9 : index
    %89 = memref.load %arg1[%c9] : memref<36xf32, #tpu.memory_space<smem>>
    %90 = vector.broadcast %89 : f32 to vector<2x16x16xf32>
    %91 = arith.mulf %90, %88 : vector<2x16x16xf32>
    %92 = arith.addf %81, %91 : vector<2x16x16xf32>
    %c9_19 = arith.constant 9 : index
    %93 = memref.load %arg2[%c9_19] : memref<36xf32, #tpu.memory_space<smem>>
    %94 = vector.broadcast %93 : f32 to vector<2x16x16xf32>
    %95 = arith.mulf %94, %88 : vector<2x16x16xf32>
    %96 = arith.addf %85, %95 : vector<2x16x16xf32>
    %97 = vector.extract_strided_slice %87 {offsets = [0, 0, 1], sizes = [2, 16, 16], strides = [1, 1, 1]} : vector<2x18x18xf32> to vector<2x16x16xf32>
    %c10 = arith.constant 10 : index
    %98 = memref.load %arg1[%c10] : memref<36xf32, #tpu.memory_space<smem>>
    %99 = vector.broadcast %98 : f32 to vector<2x16x16xf32>
    %100 = arith.mulf %99, %97 : vector<2x16x16xf32>
    %101 = arith.addf %92, %100 : vector<2x16x16xf32>
    %c10_20 = arith.constant 10 : index
    %102 = memref.load %arg2[%c10_20] : memref<36xf32, #tpu.memory_space<smem>>
    %103 = vector.broadcast %102 : f32 to vector<2x16x16xf32>
    %104 = arith.mulf %103, %97 : vector<2x16x16xf32>
    %105 = arith.addf %96, %104 : vector<2x16x16xf32>
    %106 = vector.extract_strided_slice %87 {offsets = [0, 0, 2], sizes = [2, 16, 16], strides = [1, 1, 1]} : vector<2x18x18xf32> to vector<2x16x16xf32>
    %c11 = arith.constant 11 : index
    %107 = memref.load %arg1[%c11] : memref<36xf32, #tpu.memory_space<smem>>
    %108 = vector.broadcast %107 : f32 to vector<2x16x16xf32>
    %109 = arith.mulf %108, %106 : vector<2x16x16xf32>
    %110 = arith.addf %101, %109 : vector<2x16x16xf32>
    %c11_21 = arith.constant 11 : index
    %111 = memref.load %arg2[%c11_21] : memref<36xf32, #tpu.memory_space<smem>>
    %112 = vector.broadcast %111 : f32 to vector<2x16x16xf32>
    %113 = arith.mulf %112, %106 : vector<2x16x16xf32>
    %114 = arith.addf %105, %113 : vector<2x16x16xf32>
    %115 = vector.extract_strided_slice %87 {offsets = [0, 1, 0], sizes = [2, 16, 16], strides = [1, 1, 1]} : vector<2x18x18xf32> to vector<2x16x16xf32>
    %c12 = arith.constant 12 : index
    %116 = memref.load %arg1[%c12] : memref<36xf32, #tpu.memory_space<smem>>
    %117 = vector.broadcast %116 : f32 to vector<2x16x16xf32>
    %118 = arith.mulf %117, %115 : vector<2x16x16xf32>
    %119 = arith.addf %110, %118 : vector<2x16x16xf32>
    %c12_22 = arith.constant 12 : index
    %120 = memref.load %arg2[%c12_22] : memref<36xf32, #tpu.memory_space<smem>>
    %121 = vector.broadcast %120 : f32 to vector<2x16x16xf32>
    %122 = arith.mulf %121, %115 : vector<2x16x16xf32>
    %123 = arith.addf %114, %122 : vector<2x16x16xf32>
    %124 = vector.extract_strided_slice %87 {offsets = [0, 1, 1], sizes = [2, 16, 16], strides = [1, 1, 1]} : vector<2x18x18xf32> to vector<2x16x16xf32>
    %c13 = arith.constant 13 : index
    %125 = memref.load %arg1[%c13] : memref<36xf32, #tpu.memory_space<smem>>
    %126 = vector.broadcast %125 : f32 to vector<2x16x16xf32>
    %127 = arith.mulf %126, %124 : vector<2x16x16xf32>
    %128 = arith.addf %119, %127 : vector<2x16x16xf32>
    %c13_23 = arith.constant 13 : index
    %129 = memref.load %arg2[%c13_23] : memref<36xf32, #tpu.memory_space<smem>>
    %130 = vector.broadcast %129 : f32 to vector<2x16x16xf32>
    %131 = arith.mulf %130, %124 : vector<2x16x16xf32>
    %132 = arith.addf %123, %131 : vector<2x16x16xf32>
    %133 = vector.extract_strided_slice %87 {offsets = [0, 1, 2], sizes = [2, 16, 16], strides = [1, 1, 1]} : vector<2x18x18xf32> to vector<2x16x16xf32>
    %c14 = arith.constant 14 : index
    %134 = memref.load %arg1[%c14] : memref<36xf32, #tpu.memory_space<smem>>
    %135 = vector.broadcast %134 : f32 to vector<2x16x16xf32>
    %136 = arith.mulf %135, %133 : vector<2x16x16xf32>
    %137 = arith.addf %128, %136 : vector<2x16x16xf32>
    %c14_24 = arith.constant 14 : index
    %138 = memref.load %arg2[%c14_24] : memref<36xf32, #tpu.memory_space<smem>>
    %139 = vector.broadcast %138 : f32 to vector<2x16x16xf32>
    %140 = arith.mulf %139, %133 : vector<2x16x16xf32>
    %141 = arith.addf %132, %140 : vector<2x16x16xf32>
    %142 = vector.extract_strided_slice %87 {offsets = [0, 2, 0], sizes = [2, 16, 16], strides = [1, 1, 1]} : vector<2x18x18xf32> to vector<2x16x16xf32>
    %c15 = arith.constant 15 : index
    %143 = memref.load %arg1[%c15] : memref<36xf32, #tpu.memory_space<smem>>
    %144 = vector.broadcast %143 : f32 to vector<2x16x16xf32>
    %145 = arith.mulf %144, %142 : vector<2x16x16xf32>
    %146 = arith.addf %137, %145 : vector<2x16x16xf32>
    %c15_25 = arith.constant 15 : index
    %147 = memref.load %arg2[%c15_25] : memref<36xf32, #tpu.memory_space<smem>>
    %148 = vector.broadcast %147 : f32 to vector<2x16x16xf32>
    %149 = arith.mulf %148, %142 : vector<2x16x16xf32>
    %150 = arith.addf %141, %149 : vector<2x16x16xf32>
    %151 = vector.extract_strided_slice %87 {offsets = [0, 2, 1], sizes = [2, 16, 16], strides = [1, 1, 1]} : vector<2x18x18xf32> to vector<2x16x16xf32>
    %c16 = arith.constant 16 : index
    %152 = memref.load %arg1[%c16] : memref<36xf32, #tpu.memory_space<smem>>
    %153 = vector.broadcast %152 : f32 to vector<2x16x16xf32>
    %154 = arith.mulf %153, %151 : vector<2x16x16xf32>
    %155 = arith.addf %146, %154 : vector<2x16x16xf32>
    %c16_26 = arith.constant 16 : index
    %156 = memref.load %arg2[%c16_26] : memref<36xf32, #tpu.memory_space<smem>>
    %157 = vector.broadcast %156 : f32 to vector<2x16x16xf32>
    %158 = arith.mulf %157, %151 : vector<2x16x16xf32>
    %159 = arith.addf %150, %158 : vector<2x16x16xf32>
    %160 = vector.extract_strided_slice %87 {offsets = [0, 2, 2], sizes = [2, 16, 16], strides = [1, 1, 1]} : vector<2x18x18xf32> to vector<2x16x16xf32>
    %c17 = arith.constant 17 : index
    %161 = memref.load %arg1[%c17] : memref<36xf32, #tpu.memory_space<smem>>
    %162 = vector.broadcast %161 : f32 to vector<2x16x16xf32>
    %163 = arith.mulf %162, %160 : vector<2x16x16xf32>
    %164 = arith.addf %155, %163 : vector<2x16x16xf32>
    %c17_27 = arith.constant 17 : index
    %165 = memref.load %arg2[%c17_27] : memref<36xf32, #tpu.memory_space<smem>>
    %166 = vector.broadcast %165 : f32 to vector<2x16x16xf32>
    %167 = arith.mulf %166, %160 : vector<2x16x16xf32>
    %168 = arith.addf %159, %167 : vector<2x16x16xf32>
    %c0_28 = arith.constant 0 : index
    %169 = memref.load %arg3[%c0_28] : memref<2xf32, #tpu.memory_space<smem>>
    %170 = vector.broadcast %169 : f32 to vector<2x16x16xf32>
    %171 = arith.addf %164, %170 : vector<2x16x16xf32>
    %c0_29 = arith.constant 0 : index
    %172 = memref.load %arg4[%c0_29] : memref<2xf32, #tpu.memory_space<smem>>
    %173 = vector.broadcast %172 : f32 to vector<2x16x16xf32>
    %174 = arith.addf %168, %173 : vector<2x16x16xf32>
    %c0_30 = arith.constant 0 : index
    %c0_31 = arith.constant 0 : index
    %c0_32 = arith.constant 0 : index
    %c0_33 = arith.constant 0 : index
    %175 = vector.load %arg6[%c0_30, %c0_31, %c0_32, %c0_33] : memref<2x2x16x16xf32, #tpu.memory_space<vmem>>, vector<2x1x16x16xf32>
    %176 = vector.shape_cast %175 : vector<2x1x16x16xf32> to vector<2x16x16xf32>
    %177 = arith.subf %176, %171 : vector<2x16x16xf32>
    %cst_34 = arith.constant 0.000000e+00 : f32
    %178 = vector.broadcast %cst_34 : f32 to vector<2x16x16xf32>
    %179 = arith.subf %178, %174 : vector<2x16x16xf32>
    %180 = math.exp %179 : vector<2x16x16xf32>
    %181 = arith.mulf %177, %180 : vector<2x16x16xf32>
    %c0_35 = arith.constant 0 : index
    %c0_36 = arith.constant 0 : index
    %c0_37 = arith.constant 0 : index
    %c0_38 = arith.constant 0 : index
    %182 = vector.load %arg7[%c0_35, %c0_36, %c0_37, %c0_38] : memref<2x2x16x16xf32, #tpu.memory_space<vmem>>, vector<2x1x16x16xf32>
    %183 = vector.shape_cast %182 : vector<2x1x16x16xf32> to vector<2x16x16xf32>
    %184 = vector.shape_cast %181 : vector<2x16x16xf32> to vector<2x1x16x16xf32>
    tpu.vector_store %arg7[%c0_35, %c0_36, %c0_37, %c0_38], %184 {strides = array<i32>} : memref<2x2x16x16xf32, #tpu.memory_space<vmem>>, vector<2x1x16x16xf32>,
    %cst_39 = arith.constant dense<0.000000e+00> : vector<2x16xf32>
    %185 = vector.multi_reduction <add>, %174, %cst_39 [2] : vector<2x16x16xf32> to vector<2x16xf32>
    %cst_40 = arith.constant dense<0.000000e+00> : vector<2xf32>
    %186 = vector.multi_reduction <add>, %185, %cst_40 [1] : vector<2x16xf32> to vector<2xf32>
    %187 = vector.shape_cast %186 : vector<2xf32> to vector<2x1xf32>
    %188 = arith.subf %0, %187 : vector<2x1xf32>
    %cst_41 = arith.constant 0.000000e+00 : f32
    %189 = vector.broadcast %cst_41 : f32 to vector<2x16x16xf32>
    %cst_42 = arith.constant 0.000000e+00 : f32
    %190 = vector.broadcast %cst_42 : f32 to vector<2x16x16xf32>
    %c0_43 = arith.constant 0 : index
    %c0_44 = arith.constant 0 : index
    %c0_45 = arith.constant 0 : index
    %c0_46 = arith.constant 0 : index
    %191 = vector.load %arg5[%c0_43, %c0_44, %c0_45, %c0_46] : memref<2x2x18x18xf32, #tpu.memory_space<vmem>>, vector<2x1x18x18xf32>
    %192 = vector.shape_cast %191 : vector<2x1x18x18xf32> to vector<2x18x18xf32>
    %193 = vector.extract_strided_slice %192 {offsets = [0, 0, 0], sizes = [2, 16, 16], strides = [1, 1, 1]} : vector<2x18x18xf32> to vector<2x16x16xf32>
    %c18 = arith.constant 18 : index
    %194 = memref.load %arg1[%c18] : memref<36xf32, #tpu.memory_space<smem>>
    %195 = vector.broadcast %194 : f32 to vector<2x16x16xf32>
    %196 = arith.mulf %195, %193 : vector<2x16x16xf32>
    %197 = arith.addf %189, %196 : vector<2x16x16xf32>
    %c18_47 = arith.constant 18 : index
    %198 = memref.load %arg2[%c18_47] : memref<36xf32, #tpu.memory_space<smem>>
    %199 = vector.broadcast %198 : f32 to vector<2x16x16xf32>
    %200 = arith.mulf %199, %193 : vector<2x16x16xf32>
    %201 = arith.addf %190, %200 : vector<2x16x16xf32>
    %202 = vector.extract_strided_slice %192 {offsets = [0, 0, 1], sizes = [2, 16, 16], strides = [1, 1, 1]} : vector<2x18x18xf32> to vector<2x16x16xf32>
    %c19 = arith.constant 19 : index
    %203 = memref.load %arg1[%c19] : memref<36xf32, #tpu.memory_space<smem>>
    %204 = vector.broadcast %203 : f32 to vector<2x16x16xf32>
    %205 = arith.mulf %204, %202 : vector<2x16x16xf32>
    %206 = arith.addf %197, %205 : vector<2x16x16xf32>
    %c19_48 = arith.constant 19 : index
    %207 = memref.load %arg2[%c19_48] : memref<36xf32, #tpu.memory_space<smem>>
    %208 = vector.broadcast %207 : f32 to vector<2x16x16xf32>
    %209 = arith.mulf %208, %202 : vector<2x16x16xf32>
    %210 = arith.addf %201, %209 : vector<2x16x16xf32>
    %211 = vector.extract_strided_slice %192 {offsets = [0, 0, 2], sizes = [2, 16, 16], strides = [1, 1, 1]} : vector<2x18x18xf32> to vector<2x16x16xf32>
    %c20 = arith.constant 20 : index
    %212 = memref.load %arg1[%c20] : memref<36xf32, #tpu.memory_space<smem>>
    %213 = vector.broadcast %212 : f32 to vector<2x16x16xf32>
    %214 = arith.mulf %213, %211 : vector<2x16x16xf32>
    %215 = arith.addf %206, %214 : vector<2x16x16xf32>
    %c20_49 = arith.constant 20 : index
    %216 = memref.load %arg2[%c20_49] : memref<36xf32, #tpu.memory_space<smem>>
    %217 = vector.broadcast %216 : f32 to vector<2x16x16xf32>
    %218 = arith.mulf %217, %211 : vector<2x16x16xf32>
    %219 = arith.addf %210, %218 : vector<2x16x16xf32>
    %220 = vector.extract_strided_slice %192 {offsets = [0, 1, 0], sizes = [2, 16, 16], strides = [1, 1, 1]} : vector<2x18x18xf32> to vector<2x16x16xf32>
    %c21 = arith.constant 21 : index
    %221 = memref.load %arg1[%c21] : memref<36xf32, #tpu.memory_space<smem>>
    %222 = vector.broadcast %221 : f32 to vector<2x16x16xf32>
    %223 = arith.mulf %222, %220 : vector<2x16x16xf32>
    %224 = arith.addf %215, %223 : vector<2x16x16xf32>
    %c21_50 = arith.constant 21 : index
    %225 = memref.load %arg2[%c21_50] : memref<36xf32, #tpu.memory_space<smem>>
    %226 = vector.broadcast %225 : f32 to vector<2x16x16xf32>
    %227 = arith.mulf %226, %220 : vector<2x16x16xf32>
    %228 = arith.addf %219, %227 : vector<2x16x16xf32>
    %229 = vector.extract_strided_slice %192 {offsets = [0, 1, 1], sizes = [2, 16, 16], strides = [1, 1, 1]} : vector<2x18x18xf32> to vector<2x16x16xf32>
    %c22 = arith.constant 22 : index
    %230 = memref.load %arg1[%c22] : memref<36xf32, #tpu.memory_space<smem>>
    %231 = vector.broadcast %230 : f32 to vector<2x16x16xf32>
    %232 = arith.mulf %231, %229 : vector<2x16x16xf32>
    %233 = arith.addf %224, %232 : vector<2x16x16xf32>
    %c22_51 = arith.constant 22 : index
    %234 = memref.load %arg2[%c22_51] : memref<36xf32, #tpu.memory_space<smem>>
    %235 = vector.broadcast %234 : f32 to vector<2x16x16xf32>
    %236 = arith.mulf %235, %229 : vector<2x16x16xf32>
    %237 = arith.addf %228, %236 : vector<2x16x16xf32>
    %238 = vector.extract_strided_slice %192 {offsets = [0, 1, 2], sizes = [2, 16, 16], strides = [1, 1, 1]} : vector<2x18x18xf32> to vector<2x16x16xf32>
    %c23 = arith.constant 23 : index
    %239 = memref.load %arg1[%c23] : memref<36xf32, #tpu.memory_space<smem>>
    %240 = vector.broadcast %239 : f32 to vector<2x16x16xf32>
    %241 = arith.mulf %240, %238 : vector<2x16x16xf32>
    %242 = arith.addf %233, %241 : vector<2x16x16xf32>
    %c23_52 = arith.constant 23 : index
    %243 = memref.load %arg2[%c23_52] : memref<36xf32, #tpu.memory_space<smem>>
    %244 = vector.broadcast %243 : f32 to vector<2x16x16xf32>
    %245 = arith.mulf %244, %238 : vector<2x16x16xf32>
    %246 = arith.addf %237, %245 : vector<2x16x16xf32>
    %247 = vector.extract_strided_slice %192 {offsets = [0, 2, 0], sizes = [2, 16, 16], strides = [1, 1, 1]} : vector<2x18x18xf32> to vector<2x16x16xf32>
    %c24 = arith.constant 24 : index
    %248 = memref.load %arg1[%c24] : memref<36xf32, #tpu.memory_space<smem>>
    %249 = vector.broadcast %248 : f32 to vector<2x16x16xf32>
    %250 = arith.mulf %249, %247 : vector<2x16x16xf32>
    %251 = arith.addf %242, %250 : vector<2x16x16xf32>
    %c24_53 = arith.constant 24 : index
    %252 = memref.load %arg2[%c24_53] : memref<36xf32, #tpu.memory_space<smem>>
    %253 = vector.broadcast %252 : f32 to vector<2x16x16xf32>
    %254 = arith.mulf %253, %247 : vector<2x16x16xf32>
    %255 = arith.addf %246, %254 : vector<2x16x16xf32>
    %256 = vector.extract_strided_slice %192 {offsets = [0, 2, 1], sizes = [2, 16, 16], strides = [1, 1, 1]} : vector<2x18x18xf32> to vector<2x16x16xf32>
    %c25 = arith.constant 25 : index
    %257 = memref.load %arg1[%c25] : memref<36xf32, #tpu.memory_space<smem>>
    %258 = vector.broadcast %257 : f32 to vector<2x16x16xf32>
    %259 = arith.mulf %258, %256 : vector<2x16x16xf32>
    %260 = arith.addf %251, %259 : vector<2x16x16xf32>
    %c25_54 = arith.constant 25 : index
    %261 = memref.load %arg2[%c25_54] : memref<36xf32, #tpu.memory_space<smem>>
    %262 = vector.broadcast %261 : f32 to vector<2x16x16xf32>
    %263 = arith.mulf %262, %256 : vector<2x16x16xf32>
    %264 = arith.addf %255, %263 : vector<2x16x16xf32>
    %265 = vector.extract_strided_slice %192 {offsets = [0, 2, 2], sizes = [2, 16, 16], strides = [1, 1, 1]} : vector<2x18x18xf32> to vector<2x16x16xf32>
    %c26 = arith.constant 26 : index
    %266 = memref.load %arg1[%c26] : memref<36xf32, #tpu.memory_space<smem>>
    %267 = vector.broadcast %266 : f32 to vector<2x16x16xf32>
    %268 = arith.mulf %267, %265 : vector<2x16x16xf32>
    %269 = arith.addf %260, %268 : vector<2x16x16xf32>
    %c26_55 = arith.constant 26 : index
    %270 = memref.load %arg2[%c26_55] : memref<36xf32, #tpu.memory_space<smem>>
    %271 = vector.broadcast %270 : f32 to vector<2x16x16xf32>
    %272 = arith.mulf %271, %265 : vector<2x16x16xf32>
    %273 = arith.addf %264, %272 : vector<2x16x16xf32>
    %c0_56 = arith.constant 0 : index
    %c1_57 = arith.constant 1 : index
    %c0_58 = arith.constant 0 : index
    %c0_59 = arith.constant 0 : index
    %274 = vector.load %arg5[%c0_56, %c1_57, %c0_58, %c0_59] : memref<2x2x18x18xf32, #tpu.memory_space<vmem>>, vector<2x1x18x18xf32>
    %275 = vector.shape_cast %274 : vector<2x1x18x18xf32> to vector<2x18x18xf32>
    %276 = vector.extract_strided_slice %275 {offsets = [0, 0, 0], sizes = [2, 16, 16], strides = [1, 1, 1]} : vector<2x18x18xf32> to vector<2x16x16xf32>
    %c27 = arith.constant 27 : index
    %277 = memref.load %arg1[%c27] : memref<36xf32, #tpu.memory_space<smem>>
    %278 = vector.broadcast %277 : f32 to vector<2x16x16xf32>
    %279 = arith.mulf %278, %276 : vector<2x16x16xf32>
    %280 = arith.addf %269, %279 : vector<2x16x16xf32>
    %c27_60 = arith.constant 27 : index
    %281 = memref.load %arg2[%c27_60] : memref<36xf32, #tpu.memory_space<smem>>
    %282 = vector.broadcast %281 : f32 to vector<2x16x16xf32>
    %283 = arith.mulf %282, %276 : vector<2x16x16xf32>
    %284 = arith.addf %273, %283 : vector<2x16x16xf32>
    %285 = vector.extract_strided_slice %275 {offsets = [0, 0, 1], sizes = [2, 16, 16], strides = [1, 1, 1]} : vector<2x18x18xf32> to vector<2x16x16xf32>
    %c28 = arith.constant 28 : index
    %286 = memref.load %arg1[%c28] : memref<36xf32, #tpu.memory_space<smem>>
    %287 = vector.broadcast %286 : f32 to vector<2x16x16xf32>
    %288 = arith.mulf %287, %285 : vector<2x16x16xf32>
    %289 = arith.addf %280, %288 : vector<2x16x16xf32>
    %c28_61 = arith.constant 28 : index
    %290 = memref.load %arg2[%c28_61] : memref<36xf32, #tpu.memory_space<smem>>
    %291 = vector.broadcast %290 : f32 to vector<2x16x16xf32>
    %292 = arith.mulf %291, %285 : vector<2x16x16xf32>
    %293 = arith.addf %284, %292 : vector<2x16x16xf32>
    %294 = vector.extract_strided_slice %275 {offsets = [0, 0, 2], sizes = [2, 16, 16], strides = [1, 1, 1]} : vector<2x18x18xf32> to vector<2x16x16xf32>
    %c29 = arith.constant 29 : index
    %295 = memref.load %arg1[%c29] : memref<36xf32, #tpu.memory_space<smem>>
    %296 = vector.broadcast %295 : f32 to vector<2x16x16xf32>
    %297 = arith.mulf %296, %294 : vector<2x16x16xf32>
    %298 = arith.addf %289, %297 : vector<2x16x16xf32>
    %c29_62 = arith.constant 29 : index
    %299 = memref.load %arg2[%c29_62] : memref<36xf32, #tpu.memory_space<smem>>
    %300 = vector.broadcast %299 : f32 to vector<2x16x16xf32>
    %301 = arith.mulf %300, %294 : vector<2x16x16xf32>
    %302 = arith.addf %293, %301 : vector<2x16x16xf32>
    %303 = vector.extract_strided_slice %275 {offsets = [0, 1, 0], sizes = [2, 16, 16], strides = [1, 1, 1]} : vector<2x18x18xf32> to vector<2x16x16xf32>
    %c30 = arith.constant 30 : index
    %304 = memref.load %arg1[%c30] : memref<36xf32, #tpu.memory_space<smem>>
    %305 = vector.broadcast %304 : f32 to vector<2x16x16xf32>
    %306 = arith.mulf %305, %303 : vector<2x16x16xf32>
    %307 = arith.addf %298, %306 : vector<2x16x16xf32>
    %c30_63 = arith.constant 30 : index
    %308 = memref.load %arg2[%c30_63] : memref<36xf32, #tpu.memory_space<smem>>
    %309 = vector.broadcast %308 : f32 to vector<2x16x16xf32>
    %310 = arith.mulf %309, %303 : vector<2x16x16xf32>
    %311 = arith.addf %302, %310 : vector<2x16x16xf32>
    %312 = vector.extract_strided_slice %275 {offsets = [0, 1, 1], sizes = [2, 16, 16], strides = [1, 1, 1]} : vector<2x18x18xf32> to vector<2x16x16xf32>
    %c31 = arith.constant 31 : index
    %313 = memref.load %arg1[%c31] : memref<36xf32, #tpu.memory_space<smem>>
    %314 = vector.broadcast %313 : f32 to vector<2x16x16xf32>
    %315 = arith.mulf %314, %312 : vector<2x16x16xf32>
    %316 = arith.addf %307, %315 : vector<2x16x16xf32>
    %c31_64 = arith.constant 31 : index
    %317 = memref.load %arg2[%c31_64] : memref<36xf32, #tpu.memory_space<smem>>
    %318 = vector.broadcast %317 : f32 to vector<2x16x16xf32>
    %319 = arith.mulf %318, %312 : vector<2x16x16xf32>
    %320 = arith.addf %311, %319 : vector<2x16x16xf32>
    %321 = vector.extract_strided_slice %275 {offsets = [0, 1, 2], sizes = [2, 16, 16], strides = [1, 1, 1]} : vector<2x18x18xf32> to vector<2x16x16xf32>
    %c32 = arith.constant 32 : index
    %322 = memref.load %arg1[%c32] : memref<36xf32, #tpu.memory_space<smem>>
    %323 = vector.broadcast %322 : f32 to vector<2x16x16xf32>
    %324 = arith.mulf %323, %321 : vector<2x16x16xf32>
    %325 = arith.addf %316, %324 : vector<2x16x16xf32>
    %c32_65 = arith.constant 32 : index
    %326 = memref.load %arg2[%c32_65] : memref<36xf32, #tpu.memory_space<smem>>
    %327 = vector.broadcast %326 : f32 to vector<2x16x16xf32>
    %328 = arith.mulf %327, %321 : vector<2x16x16xf32>
    %329 = arith.addf %320, %328 : vector<2x16x16xf32>
    %330 = vector.extract_strided_slice %275 {offsets = [0, 2, 0], sizes = [2, 16, 16], strides = [1, 1, 1]} : vector<2x18x18xf32> to vector<2x16x16xf32>
    %c33 = arith.constant 33 : index
    %331 = memref.load %arg1[%c33] : memref<36xf32, #tpu.memory_space<smem>>
    %332 = vector.broadcast %331 : f32 to vector<2x16x16xf32>
    %333 = arith.mulf %332, %330 : vector<2x16x16xf32>
    %334 = arith.addf %325, %333 : vector<2x16x16xf32>
    %c33_66 = arith.constant 33 : index
    %335 = memref.load %arg2[%c33_66] : memref<36xf32, #tpu.memory_space<smem>>
    %336 = vector.broadcast %335 : f32 to vector<2x16x16xf32>
    %337 = arith.mulf %336, %330 : vector<2x16x16xf32>
    %338 = arith.addf %329, %337 : vector<2x16x16xf32>
    %339 = vector.extract_strided_slice %275 {offsets = [0, 2, 1], sizes = [2, 16, 16], strides = [1, 1, 1]} : vector<2x18x18xf32> to vector<2x16x16xf32>
    %c34 = arith.constant 34 : index
    %340 = memref.load %arg1[%c34] : memref<36xf32, #tpu.memory_space<smem>>
    %341 = vector.broadcast %340 : f32 to vector<2x16x16xf32>
    %342 = arith.mulf %341, %339 : vector<2x16x16xf32>
    %343 = arith.addf %334, %342 : vector<2x16x16xf32>
    %c34_67 = arith.constant 34 : index
    %344 = memref.load %arg2[%c34_67] : memref<36xf32, #tpu.memory_space<smem>>
    %345 = vector.broadcast %344 : f32 to vector<2x16x16xf32>
    %346 = arith.mulf %345, %339 : vector<2x16x16xf32>
    %347 = arith.addf %338, %346 : vector<2x16x16xf32>
    %348 = vector.extract_strided_slice %275 {offsets = [0, 2, 2], sizes = [2, 16, 16], strides = [1, 1, 1]} : vector<2x18x18xf32> to vector<2x16x16xf32>
    %c35 = arith.constant 35 : index
    %349 = memref.load %arg1[%c35] : memref<36xf32, #tpu.memory_space<smem>>
    %350 = vector.broadcast %349 : f32 to vector<2x16x16xf32>
    %351 = arith.mulf %350, %348 : vector<2x16x16xf32>
    %352 = arith.addf %343, %351 : vector<2x16x16xf32>
    %c35_68 = arith.constant 35 : index
    %353 = memref.load %arg2[%c35_68] : memref<36xf32, #tpu.memory_space<smem>>
    %354 = vector.broadcast %353 : f32 to vector<2x16x16xf32>
    %355 = arith.mulf %354, %348 : vector<2x16x16xf32>
    %356 = arith.addf %347, %355 : vector<2x16x16xf32>
    %c1_69 = arith.constant 1 : index
    %357 = memref.load %arg3[%c1_69] : memref<2xf32, #tpu.memory_space<smem>>
    %358 = vector.broadcast %357 : f32 to vector<2x16x16xf32>
    %359 = arith.addf %352, %358 : vector<2x16x16xf32>
    %c1_70 = arith.constant 1 : index
    %360 = memref.load %arg4[%c1_70] : memref<2xf32, #tpu.memory_space<smem>>
    %361 = vector.broadcast %360 : f32 to vector<2x16x16xf32>
    %362 = arith.addf %356, %361 : vector<2x16x16xf32>
    %c0_71 = arith.constant 0 : index
    %c1_72 = arith.constant 1 : index
    %c0_73 = arith.constant 0 : index
    %c0_74 = arith.constant 0 : index
    %363 = vector.load %arg6[%c0_71, %c1_72, %c0_73, %c0_74] : memref<2x2x16x16xf32, #tpu.memory_space<vmem>>, vector<2x1x16x16xf32>
    %364 = vector.shape_cast %363 : vector<2x1x16x16xf32> to vector<2x16x16xf32>
    %365 = arith.subf %364, %359 : vector<2x16x16xf32>
    %cst_75 = arith.constant 0.000000e+00 : f32
    %366 = vector.broadcast %cst_75 : f32 to vector<2x16x16xf32>
    %367 = arith.subf %366, %362 : vector<2x16x16xf32>
    %368 = math.exp %367 : vector<2x16x16xf32>
    %369 = arith.mulf %365, %368 : vector<2x16x16xf32>
    %c0_76 = arith.constant 0 : index
    %c1_77 = arith.constant 1 : index
    %c0_78 = arith.constant 0 : index
    %c0_79 = arith.constant 0 : index
    %370 = vector.load %arg7[%c0_76, %c1_77, %c0_78, %c0_79] : memref<2x2x16x16xf32, #tpu.memory_space<vmem>>, vector<2x1x16x16xf32>
    %371 = vector.shape_cast %370 : vector<2x1x16x16xf32> to vector<2x16x16xf32>
    %372 = vector.shape_cast %369 : vector<2x16x16xf32> to vector<2x1x16x16xf32>
    tpu.vector_store %arg7[%c0_76, %c1_77, %c0_78, %c0_79], %372 {strides = array<i32>} : memref<2x2x16x16xf32, #tpu.memory_space<vmem>>, vector<2x1x16x16xf32>,
    %cst_80 = arith.constant dense<0.000000e+00> : vector<2x16xf32>
    %373 = vector.multi_reduction <add>, %362, %cst_80 [2] : vector<2x16x16xf32> to vector<2x16xf32>
    %cst_81 = arith.constant dense<0.000000e+00> : vector<2xf32>
    %374 = vector.multi_reduction <add>, %373, %cst_81 [1] : vector<2x16xf32> to vector<2xf32>
    %375 = vector.shape_cast %374 : vector<2xf32> to vector<2x1xf32>
    %376 = arith.subf %188, %375 : vector<2x1xf32>
    %c0_82 = arith.constant 0 : index
    %c0_83 = arith.constant 0 : index
    %377 = vector.load %arg8[%c0_82, %c0_83] : memref<2x1xf32, #tpu.memory_space<vmem>>, vector<2x1xf32>
    tpu.vector_store %arg8[%c0_82, %c0_83], %376 {strides = array<i32>} : memref<2x1xf32, #tpu.memory_space<vmem>>, vector<2x1xf32>,
    return
  }
  func.func @transform_0(%arg0: i32) -> i32 {
    %c0_i32 = arith.constant 0 : i32
    %c0_i32_0 = arith.constant 0 : i32
    return %c0_i32 : i32
  }
  func.func @transform_1(%arg0: i32) -> i32 {
    %c0_i32 = arith.constant 0 : i32
    %c0_i32_0 = arith.constant 0 : i32
    return %c0_i32 : i32
  }
  func.func @transform_2(%arg0: i32) -> i32 {
    %c0_i32 = arith.constant 0 : i32
    %c0_i32_0 = arith.constant 0 : i32
    return %c0_i32 : i32
  }
  func.func @transform_3(%arg0: i32) -> i32 {
    %c0_i32 = arith.constant 0 : i32
    %c0_i32_0 = arith.constant 0 : i32
    return %c0_i32 : i32
  }
  func.func @transform_4(%arg0: i32) -> (i32, i32, i32, i32) {
    %c0_i32 = arith.constant 0 : i32
    %c0_i32_0 = arith.constant 0 : i32
    %c0_i32_1 = arith.constant 0 : i32
    %c0_i32_2 = arith.constant 0 : i32
    return %arg0, %c0_i32, %c0_i32_0, %c0_i32_1 : i32, i32, i32, i32
  }
  func.func @transform_5(%arg0: i32) -> (i32, i32, i32, i32) {
    %c0_i32 = arith.constant 0 : i32
    %c0_i32_0 = arith.constant 0 : i32
    %c0_i32_1 = arith.constant 0 : i32
    %c0_i32_2 = arith.constant 0 : i32
    return %arg0, %c0_i32, %c0_i32_0, %c0_i32_1 : i32, i32, i32, i32
  }
  func.func @transform_6(%arg0: i32) -> (i32, i32, i32, i32) {
    %c0_i32 = arith.constant 0 : i32
    %c0_i32_0 = arith.constant 0 : i32
    %c0_i32_1 = arith.constant 0 : i32
    %c0_i32_2 = arith.constant 0 : i32
    return %arg0, %c0_i32, %c0_i32_0, %c0_i32_1 : i32, i32, i32, i32
  }
  func.func @transform_7(%arg0: i32) -> (i32, i32) {
    %c0_i32 = arith.constant 0 : i32
    %c0_i32_0 = arith.constant 0 : i32
    return %arg0, %c0_i32 : i32, i32
  }
}

</mosaic_0001>

<llo_original>
// kernel: split_forward.1
$region0: #{split_forward.1}
  #allocation0 [shape = 'u32[]', space=smem, size = 0x4, offset = 0x4, fixed_abs, tag = 'smem constant byte address 0x4 - core index']
  #allocation1 [shape = 'u32[72,128]{1,0:T(1,128)}', space=vmem, size = 0x9000, scoped, tag = 'internal scratch']
  %s0 = inlined_call_operand.vmem [shape: f32[36], index: 0, kind: input, shape index: {}]
  %s1 = inlined_call_operand.vmem [shape: f32[36], index: 1, kind: input, shape index: {}]
  %s2 = inlined_call_operand.vmem [shape: f32[2], index: 2, kind: input, shape index: {}]
  %s3 = inlined_call_operand.vmem [shape: f32[2], index: 3, kind: input, shape index: {}]
  %s4 = inlined_call_operand.vmem [shape: f32[2,2,18,18], index: 4, kind: input, shape index: {}]
  %s5 = inlined_call_operand.vmem [shape: f32[2,2,16,16], index: 5, kind: input, shape index: {}]
  %s6 = inlined_call_operand.hbm [shape: f32[2,2,16,16], index: 6, kind: output, shape index: {0}]
  %s7 = inlined_call_operand.vmem [shape: f32[2,1], index: 7, kind: output, shape index: {1}]
  %8 = xla_tuple %s6, %s7
  %s9 = sld [smem:[#allocation0]]
  $region58: #{split_forward.1} parent=0
    _
  %s11 = ssub.s32 1, %s9
  %s12 = scalar_select 0, %s11, %s9
  $region1: #{split_forward.1} parent=0
    #allocation2 [shape = 'u8[512]{0}', space=smem, size = 0x200, scoped, tag = 'input window, operand 0, single buffered']
    #allocation3 [shape = 's32[1]{0}', space=sflag, size = 0x4, scoped, tag = 'scoped memory for split_forward.1']
    #allocation4 [shape = 's32[1]{0}', space=sflag, size = 0x4, scoped, tag = 'scoped memory for split_forward.1']
    #allocation5 [shape = 'u8[512]{0}', space=smem, size = 0x200, scoped, tag = 'input window, operand 1, single buffered']
    #allocation6 [shape = 's32[1]{0}', space=sflag, size = 0x4, scoped, tag = 'scoped memory for split_forward.1']
    #allocation7 [shape = 'u8[512]{0}', space=smem, size = 0x200, scoped, tag = 'input window, operand 2, single buffered']
    #allocation8 [shape = 'u8[512]{0}', space=smem, size = 0x200, scoped, tag = 'input window, operand 3, single buffered']
    #allocation9 [shape = 's32[1]{0}', space=sflag, size = 0x4, scoped, tag = 'scoped memory for split_forward.1']
    #allocation10 [shape = 'u8[32768]{0}', space=vmem, size = 0x8000, scoped, tag = 'output window, operand 0, single buffered']
    %13 = vsyncpa [#allocation4], 0
    %14 = vsyncpa [#allocation6], 0
    %15 = vsyncpa [#allocation9], 0
    %16 = vsyncpa [#allocation3], 0
    // Predicated region
    $region2: #{split_forward.1} parent=1 // pred_check
      _
    $region3: #{split_forward.1} parent=1 // pred_check_branch
      %18 = sbr.rel (0) target = $region5
    $region4: #{split_forward.1} parent=1 // pred_region
      %20 = vsyncadd [#allocation4], 0
      %s22 = sshll.u32 %s0, 4
      %s23 = int_to_ptr.vmem [resolvable:$true] %s22
      %25 = dma.vmem_to_smem %s23, 16, [#allocation2], [#allocation4]
    $region5: #{split_forward.1} parent=1 // pred_fallthru
      _
    // Predicated region
    $region6: #{split_forward.1} parent=1 // pred_check
      _
    $region7: #{split_forward.1} parent=1 // pred_check_branch
      %27 = sbr.rel (0) target = $region9
    $region8: #{split_forward.1} parent=1 // pred_region
      %29 = vsyncadd [#allocation6], 0
      %s31 = sshll.u32 %s1, 4
      %s32 = int_to_ptr.vmem [resolvable:$true] %s31
      %34 = dma.vmem_to_smem %s32, 16, [#allocation5], [#allocation6]
    $region9: #{split_forward.1} parent=1 // pred_fallthru
      _
    // Predicated region
    $region10: #{split_forward.1} parent=1 // pred_check
      _
    $region11: #{split_forward.1} parent=1 // pred_check_branch
      %36 = sbr.rel (0) target = $region13
    $region12: #{split_forward.1} parent=1 // pred_region
      %38 = vsyncadd [#allocation6], 0
      %s40 = sshll.u32 %s2, 4
      %s41 = int_to_ptr.vmem [resolvable:$true] %s40
      %43 = dma.vmem_to_smem %s41, 16, [#allocation7], [#allocation6]
    $region13: #{split_forward.1} parent=1 // pred_fallthru
      _
    // Predicated region
    $region14: #{split_forward.1} parent=1 // pred_check
      _
    $region15: #{split_forward.1} parent=1 // pred_check_branch
      %45 = sbr.rel (0) target = $region17
    $region16: #{split_forward.1} parent=1 // pred_region
      %47 = vsyncadd [#allocation9], 0
      %s49 = sshll.u32 %s3, 4
      %s50 = int_to_ptr.vmem [resolvable:$true] %s49
      %52 = dma.vmem_to_smem %s50, 16, [#allocation8], [#allocation9]
    $region17: #{split_forward.1} parent=1 // pred_fallthru
      _
    // Predicated region
    $region18: #{split_forward.1} parent=1 // pred_check
      _
    $region19: #{split_forward.1} parent=1 // pred_check_branch
      %54 = sbr.rel (0) target = $region21
    $region20: #{split_forward.1} parent=1 // pred_region
      _
    $region21: #{split_forward.1} parent=1 // pred_fallthru
      _
    // Predicated region
    $region22: #{split_forward.1} parent=1 // pred_check
      _
    $region23: #{split_forward.1} parent=1 // pred_check_branch
      %56 = sbr.rel (0) target = $region25
    $region24: #{split_forward.1} parent=1 // pred_region
      _
    $region25: #{split_forward.1} parent=1 // pred_fallthru
      _
    // Predicated region
    $region26: #{split_forward.1} parent=1 // pred_check
      _
    $region27: #{split_forward.1} parent=1 // pred_check_branch
      %58 = sbr.rel (0) target = $region29
    $region28: #{split_forward.1} parent=1 // pred_region
      %60 = dma.done [#allocation4], 16
    $region29: #{split_forward.1} parent=1 // pred_fallthru
      _
    // Predicated region
    $region30: #{split_forward.1} parent=1 // pred_check
      _
    $region31: #{split_forward.1} parent=1 // pred_check_branch
      %62 = sbr.rel (0) target = $region33
    $region32: #{split_forward.1} parent=1 // pred_region
      %64 = dma.done [#allocation6], 16
    $region33: #{split_forward.1} parent=1 // pred_fallthru
      _
    // Predicated region
    $region34: #{split_forward.1} parent=1 // pred_check
      _
    $region35: #{split_forward.1} parent=1 // pred_check_branch
      %66 = sbr.rel (0) target = $region37
    $region36: #{split_forward.1} parent=1 // pred_region
      %68 = dma.done [#allocation6], 16
    $region37: #{split_forward.1} parent=1 // pred_fallthru
      _
    // Predicated region
    $region38: #{split_forward.1} parent=1 // pred_check
      _
    $region39: #{split_forward.1} parent=1 // pred_check_branch
      %70 = sbr.rel (0) target = $region41
    $region40: #{split_forward.1} parent=1 // pred_region
      %72 = dma.done [#allocation9], 16
    $region41: #{split_forward.1} parent=1 // pred_fallthru
      _
    %73 = sfence
    %v74 = vld [vmem:[%s4] sm:$0xff]
    %v75 = vld [vmem:[%s4 + $0x8] sm:$0xff]
    %v76 = vld [vmem:[%s4 + $0x10] sm:$0x3]
    %v77 = vld [vmem:[%s4 + $0x30] sm:$0xff]
    %v78 = vld [vmem:[%s4 + $0x38] sm:$0xff]
    %v79 = vld [vmem:[%s4 + $0x40] sm:$0x3]
    %s80 = sld [smem:[#allocation2]]
    %v81 = vstv %s80
    %v82 = vmul.f32 %v81, %v74
    %v83 = vmul.f32 %v81, %v75
    %v84 = vmul.f32 %v81, %v77
    %v85 = vmul.f32 %v81, %v78
    %v86 = vadd.f32 %v82, 0.0
    %v87 = vadd.f32 %v83, 0.0
    %v88 = vadd.f32 %v84, 0.0
    %v89 = vadd.f32 %v85, 0.0
    %s90 = sld [smem:[#allocation5]]
    %v91 = vstv %s90
    %v92 = vmul.f32 %v91, %v74
    %v93 = vmul.f32 %v91, %v75
    %v94 = vmul.f32 %v91, %v77
    %v95 = vmul.f32 %v91, %v78
    %v96 = vadd.f32 %v92, 0.0
    %v97 = vadd.f32 %v93, 0.0
    %v98 = vadd.f32 %v94, 0.0
    %v99 = vadd.f32 %v95, 0.0
    %s100 = sld [smem:[#allocation2 + $0x1]]
    %v101 = vstv %s100
    %v102 = vmul.f32 %v101, %v74
    %v103 = vmul.f32 %v101, %v75
    %v104 = vmul.f32 %v101, %v77
    %v105 = vmul.f32 %v101, %v78
    %110 = vrot.lane.b32.xlu0 %v102, 127
    %v111 = vpop.permute.xlu0 %110
    %112 = vrot.lane.b32.xlu0 %v103, 127
    %v113 = vpop.permute.xlu0 %112
    %114 = vrot.lane.b32.xlu0 %v104, 127
    %v115 = vpop.permute.xlu0 %114
    %116 = vrot.lane.b32.xlu0 %v105, 127
    %v117 = vpop.permute.xlu0 %116
    %v122 = vadd.f32 %v86, %v111
    %v123 = vadd.f32 %v87, %v113
    %v124 = vadd.f32 %v88, %v115
    %v125 = vadd.f32 %v89, %v117
    %s126 = sld [smem:[#allocation5 + $0x1]]
    %v127 = vstv %s126
    %v128 = vmul.f32 %v127, %v74
    %v129 = vmul.f32 %v127, %v75
    %v130 = vmul.f32 %v127, %v77
    %v131 = vmul.f32 %v127, %v78
    %136 = vrot.lane.b32.xlu0 %v128, 127
    %v137 = vpop.permute.xlu0 %136
    %138 = vrot.lane.b32.xlu0 %v129, 127
    %v139 = vpop.permute.xlu0 %138
    %140 = vrot.lane.b32.xlu0 %v130, 127
    %v141 = vpop.permute.xlu0 %140
    %142 = vrot.lane.b32.xlu0 %v131, 127
    %v143 = vpop.permute.xlu0 %142
    %v148 = vadd.f32 %v96, %v137
    %v149 = vadd.f32 %v97, %v139
    %v150 = vadd.f32 %v98, %v141
    %v151 = vadd.f32 %v99, %v143
    %s152 = sld [smem:[#allocation2 + $0x2]]
    %v153 = vstv %s152
    %v154 = vmul.f32 %v153, %v74
    %v155 = vmul.f32 %v153, %v75
    %v156 = vmul.f32 %v153, %v77
    %v157 = vmul.f32 %v153, %v78
    %162 = vrot.lane.b32.xlu0 %v154, 126
    %v163 = vpop.permute.xlu0 %162
    %164 = vrot.lane.b32.xlu0 %v155, 126
    %v165 = vpop.permute.xlu0 %164
    %166 = vrot.lane.b32.xlu0 %v156, 126
    %v167 = vpop.permute.xlu0 %166
    %168 = vrot.lane.b32.xlu0 %v157, 126
    %v169 = vpop.permute.xlu0 %168
    %v174 = vadd.f32 %v122, %v163
    %v175 = vadd.f32 %v123, %v165
    %v176 = vadd.f32 %v124, %v167
    %v177 = vadd.f32 %v125, %v169
    %s178 = sld [smem:[#allocation5 + $0x2]]
    %v179 = vstv %s178
    %v180 = vmul.f32 %v179, %v74
    %v181 = vmul.f32 %v179, %v75
    %v182 = vmul.f32 %v179, %v77
    %v183 = vmul.f32 %v179, %v78
    %188 = vrot.lane.b32.xlu0 %v180, 126
    %v189 = vpop.permute.xlu0 %188
    %190 = vrot.lane.b32.xlu0 %v181, 126
    %v191 = vpop.permute.xlu0 %190
    %192 = vrot.lane.b32.xlu0 %v182, 126
    %v193 = vpop.permute.xlu0 %192
    %194 = vrot.lane.b32.xlu0 %v183, 126
    %v195 = vpop.permute.xlu0 %194
    %v200 = vadd.f32 %v148, %v189
    %v201 = vadd.f32 %v149, %v191
    %v202 = vadd.f32 %v150, %v193
    %v203 = vadd.f32 %v151, %v195
    %s204 = sld [smem:[#allocation2 + $0x3]]
    %v205 = vstv %s204
    %v206 = vmul.f32 %v205, %v74
    %v207 = vmul.f32 %v205, %v75
    %v208 = vmul.f32 %v205, %v76
    %v209 = vmul.f32 %v205, %v77
    %v210 = vmul.f32 %v205, %v78
    %v211 = vmul.f32 %v205, %v79
    %vm218 = vcmask 1046528
    %v219 = vrot.slane %v206, 1
    %v220 = vrot.slane %v207, 1
    %v221 = vsel %vm218, %v219, %v220
    %v222 = vrot.slane %v208, 1
    %v223 = vsel %vm218, %v220, %v222
    %v224 = vrot.slane %v209, 1
    %v225 = vrot.slane %v210, 1
    %v226 = vsel %vm218, %v224, %v225
    %v227 = vrot.slane %v211, 1
    %v228 = vsel %vm218, %v225, %v227
    %v233 = vadd.f32 %v174, %v221
    %v234 = vadd.f32 %v175, %v223
    %v235 = vadd.f32 %v176, %v226
    %v236 = vadd.f32 %v177, %v228
    %s237 = sld [smem:[#allocation5 + $0x3]]
    %v238 = vstv %s237
    %v239 = vmul.f32 %v238, %v74
    %v240 = vmul.f32 %v238, %v75
    %v241 = vmul.f32 %v238, %v76
    %v242 = vmul.f32 %v238, %v77
    %v243 = vmul.f32 %v238, %v78
    %v244 = vmul.f32 %v238, %v79
    %v251 = vrot.slane %v239, 1
    %v252 = vrot.slane %v240, 1
    %v253 = vsel %vm218, %v251, %v252
    %v254 = vrot.slane %v241, 1
    %v255 = vsel %vm218, %v252, %v254
    %v256 = vrot.slane %v242, 1
    %v257 = vrot.slane %v243, 1
    %v258 = vsel %vm218, %v256, %v257
    %v259 = vrot.slane %v244, 1
    %v260 = vsel %vm218, %v257, %v259
    %v265 = vadd.f32 %v200, %v253
    %v266 = vadd.f32 %v201, %v255
    %v267 = vadd.f32 %v202, %v258
    %v268 = vadd.f32 %v203, %v260
    %s269 = sld [smem:[#allocation2 + $0x4]]
    %v270 = vstv %s269
    %v271 = vmul.f32 %v270, %v74
    %v272 = vmul.f32 %v270, %v75
    %v273 = vmul.f32 %v270, %v76
    %v274 = vmul.f32 %v270, %v77
    %v275 = vmul.f32 %v270, %v78
    %v276 = vmul.f32 %v270, %v79
    %v283 = vrot.slane %v271, 1
    %v284 = vrot.slane %v272, 1
    %v285 = vsel %vm218, %v283, %v284
    %v286 = vrot.slane %v273, 1
    %v287 = vsel %vm218, %v284, %v286
    %v288 = vrot.slane %v274, 1
    %v289 = vrot.slane %v275, 1
    %v290 = vsel %vm218, %v288, %v289
    %v291 = vrot.slane %v276, 1
    %v292 = vsel %vm218, %v289, %v291
    %293 = vrot.lane.b32.xlu0 %v285, 127
    %v294 = vpop.permute.xlu0 %293
    %295 = vrot.lane.b32.xlu0 %v287, 127
    %v296 = vpop.permute.xlu0 %295
    %297 = vrot.lane.b32.xlu0 %v290, 127
    %v298 = vpop.permute.xlu0 %297
    %299 = vrot.lane.b32.xlu0 %v292, 127
    %v300 = vpop.permute.xlu0 %299
    %v305 = vadd.f32 %v233, %v294
    %v306 = vadd.f32 %v234, %v296
    %v307 = vadd.f32 %v235, %v298
    %v308 = vadd.f32 %v236, %v300
    %s309 = sld [smem:[#allocation5 + $0x4]]
    %v310 = vstv %s309
    %v311 = vmul.f32 %v310, %v74
    %v312 = vmul.f32 %v310, %v75
    %v313 = vmul.f32 %v310, %v76
    %v314 = vmul.f32 %v310, %v77
    %v315 = vmul.f32 %v310, %v78
    %v316 = vmul.f32 %v310, %v79
    %v323 = vrot.slane %v311, 1
    %v324 = vrot.slane %v312, 1
    %v325 = vsel %vm218, %v323, %v324
    %v326 = vrot.slane %v313, 1
    %v327 = vsel %vm218, %v324, %v326
    %v328 = vrot.slane %v314, 1
    %v329 = vrot.slane %v315, 1
    %v330 = vsel %vm218, %v328, %v329
    %v331 = vrot.slane %v316, 1
    %v332 = vsel %vm218, %v329, %v331
    %333 = vrot.lane.b32.xlu0 %v325, 127
    %v334 = vpop.permute.xlu0 %333
    %335 = vrot.lane.b32.xlu0 %v327, 127
    %v336 = vpop.permute.xlu0 %335
    %337 = vrot.lane.b32.xlu0 %v330, 127
    %v338 = vpop.permute.xlu0 %337
    %339 = vrot.lane.b32.xlu0 %v332, 127
    %v340 = vpop.permute.xlu0 %339
    %v345 = vadd.f32 %v265, %v334
    %v346 = vadd.f32 %v266, %v336
    %v347 = vadd.f32 %v267, %v338
    %v348 = vadd.f32 %v268, %v340
    %s349 = sld [smem:[#allocation2 + $0x5]]
    %v350 = vstv %s349
    %v351 = vmul.f32 %v350, %v74
    %v352 = vmul.f32 %v350, %v75
    %v353 = vmul.f32 %v350, %v76
    %v354 = vmul.f32 %v350, %v77
    %v355 = vmul.f32 %v350, %v78
    %v356 = vmul.f32 %v350, %v79
    %v363 = vrot.slane %v351, 1
    %v364 = vrot.slane %v352, 1
    %v365 = vsel %vm218, %v363, %v364
    %v366 = vrot.slane %v353, 1
    %v367 = vsel %vm218, %v364, %v366
    %v368 = vrot.slane %v354, 1
    %v369 = vrot.slane %v355, 1
    %v370 = vsel %vm218, %v368, %v369
    %v371 = vrot.slane %v356, 1
    %v372 = vsel %vm218, %v369, %v371
    %373 = vrot.lane.b32.xlu0 %v365, 126
    %v374 = vpop.permute.xlu0 %373
    %375 = vrot.lane.b32.xlu0 %v367, 126
    %v376 = vpop.permute.xlu0 %375
    %377 = vrot.lane.b32.xlu0 %v370, 126
    %v378 = vpop.permute.xlu0 %377
    %379 = vrot.lane.b32.xlu0 %v372, 126
    %v380 = vpop.permute.xlu0 %379
    %v385 = vadd.f32 %v305, %v374
    %v386 = vadd.f32 %v306, %v376
    %v387 = vadd.f32 %v307, %v378
    %v388 = vadd.f32 %v308, %v380
    %s389 = sld [smem:[#allocation5 + $0x5]]
    %v390 = vstv %s389
    %v391 = vmul.f32 %v390, %v74
    %v392 = vmul.f32 %v390, %v75
    %v393 = vmul.f32 %v390, %v76
    %v394 = vmul.f32 %v390, %v77
    %v395 = vmul.f32 %v390, %v78
    %v396 = vmul.f32 %v390, %v79
    %v403 = vrot.slane %v391, 1
    %v404 = vrot.slane %v392, 1
    %v405 = vsel %vm218, %v403, %v404
    %v406 = vrot.slane %v393, 1
    %v407 = vsel %vm218, %v404, %v406
    %v408 = vrot.slane %v394, 1
    %v409 = vrot.slane %v395, 1
    %v410 = vsel %vm218, %v408, %v409
    %v411 = vrot.slane %v396, 1
    %v412 = vsel %vm218, %v409, %v411
    %413 = vrot.lane.b32.xlu0 %v405, 126
    %v414 = vpop.permute.xlu0 %413
    %415 = vrot.lane.b32.xlu0 %v407, 126
    %v416 = vpop.permute.xlu0 %415
    %417 = vrot.lane.b32.xlu0 %v410, 126
    %v418 = vpop.permute.xlu0 %417
    %419 = vrot.lane.b32.xlu0 %v412, 126
    %v420 = vpop.permute.xlu0 %419
    %v425 = vadd.f32 %v345, %v414
    %v426 = vadd.f32 %v346, %v416
    %v427 = vadd.f32 %v347, %v418
    %v428 = vadd.f32 %v348, %v420
    %s429 = sld [smem:[#allocation2 + $0x6]]
    %v430 = vstv %s429
    %v431 = vmul.f32 %v430, %v74
    %v432 = vmul.f32 %v430, %v75
    %v433 = vmul.f32 %v430, %v76
    %v434 = vmul.f32 %v430, %v77
    %v435 = vmul.f32 %v430, %v78
    %v436 = vmul.f32 %v430, %v79
    %vm443 = vcmask 1045504
    %v444 = vrot.slane %v431, 2
    %v445 = vrot.slane %v432, 2
    %v446 = vsel %vm443, %v444, %v445
    %v447 = vrot.slane %v433, 2
    %v448 = vsel %vm443, %v445, %v447
    %v449 = vrot.slane %v434, 2
    %v450 = vrot.slane %v435, 2
    %v451 = vsel %vm443, %v449, %v450
    %v452 = vrot.slane %v436, 2
    %v453 = vsel %vm443, %v450, %v452
    %v458 = vadd.f32 %v385, %v446
    %v459 = vadd.f32 %v386, %v448
    %v460 = vadd.f32 %v387, %v451
    %v461 = vadd.f32 %v388, %v453
    %s462 = sld [smem:[#allocation5 + $0x6]]
    %v463 = vstv %s462
    %v464 = vmul.f32 %v463, %v74
    %v465 = vmul.f32 %v463, %v75
    %v466 = vmul.f32 %v463, %v76
    %v467 = vmul.f32 %v463, %v77
    %v468 = vmul.f32 %v463, %v78
    %v469 = vmul.f32 %v463, %v79
    %v476 = vrot.slane %v464, 2
    %v477 = vrot.slane %v465, 2
    %v478 = vsel %vm443, %v476, %v477
    %v479 = vrot.slane %v466, 2
    %v480 = vsel %vm443, %v477, %v479
    %v481 = vrot.slane %v467, 2
    %v482 = vrot.slane %v468, 2
    %v483 = vsel %vm443, %v481, %v482
    %v484 = vrot.slane %v469, 2
    %v485 = vsel %vm443, %v482, %v484
    %v490 = vadd.f32 %v425, %v478
    %v491 = vadd.f32 %v426, %v480
    %v492 = vadd.f32 %v427, %v483
    %v493 = vadd.f32 %v428, %v485
    %s494 = sld [smem:[#allocation2 + $0x7]]
    %v495 = vstv %s494
    %v496 = vmul.f32 %v495, %v74
    %v497 = vmul.f32 %v495, %v75
    %v498 = vmul.f32 %v495, %v76
    %v499 = vmul.f32 %v495, %v77
    %v500 = vmul.f32 %v495, %v78
    %v501 = vmul.f32 %v495, %v79
    %v508 = vrot.slane %v496, 2
    %v509 = vrot.slane %v497, 2
    %v510 = vsel %vm443, %v508, %v509
    %v511 = vrot.slane %v498, 2
    %v512 = vsel %vm443, %v509, %v511
    %v513 = vrot.slane %v499, 2
    %v514 = vrot.slane %v500, 2
    %v515 = vsel %vm443, %v513, %v514
    %v516 = vrot.slane %v501, 2
    %v517 = vsel %vm443, %v514, %v516
    %518 = vrot.lane.b32.xlu0 %v510, 127
    %v519 = vpop.permute.xlu0 %518
    %520 = vrot.lane.b32.xlu0 %v512, 127
    %v521 = vpop.permute.xlu0 %520
    %522 = vrot.lane.b32.xlu0 %v515, 127
    %v523 = vpop.permute.xlu0 %522
    %524 = vrot.lane.b32.xlu0 %v517, 127
    %v525 = vpop.permute.xlu0 %524
    %v530 = vadd.f32 %v458, %v519
    %v531 = vadd.f32 %v459, %v521
    %v532 = vadd.f32 %v460, %v523
    %v533 = vadd.f32 %v461, %v525
    %s534 = sld [smem:[#allocation5 + $0x7]]
    %v535 = vstv %s534
    %v536 = vmul.f32 %v535, %v74
    %v537 = vmul.f32 %v535, %v75
    %v538 = vmul.f32 %v535, %v76
    %v539 = vmul.f32 %v535, %v77
    %v540 = vmul.f32 %v535, %v78
    %v541 = vmul.f32 %v535, %v79
    %v548 = vrot.slane %v536, 2
    %v549 = vrot.slane %v537, 2
    %v550 = vsel %vm443, %v548, %v549
    %v551 = vrot.slane %v538, 2
    %v552 = vsel %vm443, %v549, %v551
    %v553 = vrot.slane %v539, 2
    %v554 = vrot.slane %v540, 2
    %v555 = vsel %vm443, %v553, %v554
    %v556 = vrot.slane %v541, 2
    %v557 = vsel %vm443, %v554, %v556
    %558 = vrot.lane.b32.xlu0 %v550, 127
    %v559 = vpop.permute.xlu0 %558
    %560 = vrot.lane.b32.xlu0 %v552, 127
    %v561 = vpop.permute.xlu0 %560
    %562 = vrot.lane.b32.xlu0 %v555, 127
    %v563 = vpop.permute.xlu0 %562
    %564 = vrot.lane.b32.xlu0 %v557, 127
    %v565 = vpop.permute.xlu0 %564
    %v570 = vadd.f32 %v490, %v559
    %v571 = vadd.f32 %v491, %v561
    %v572 = vadd.f32 %v492, %v563
    %v573 = vadd.f32 %v493, %v565
    %s574 = sld [smem:[#allocation2 + $0x8]]
    %v575 = vstv %s574
    %v576 = vmul.f32 %v575, %v74
    %v577 = vmul.f32 %v575, %v75
    %v578 = vmul.f32 %v575, %v76
    %v579 = vmul.f32 %v575, %v77
    %v580 = vmul.f32 %v575, %v78
    %v581 = vmul.f32 %v575, %v79
    %v588 = vrot.slane %v576, 2
    %v589 = vrot.slane %v577, 2
    %v590 = vsel %vm443, %v588, %v589
    %v591 = vrot.slane %v578, 2
    %v592 = vsel %vm443, %v589, %v591
    %v593 = vrot.slane %v579, 2
    %v594 = vrot.slane %v580, 2
    %v595 = vsel %vm443, %v593, %v594
    %v596 = vrot.slane %v581, 2
    %v597 = vsel %vm443, %v594, %v596
    %598 = vrot.lane.b32.xlu0 %v590, 126
    %v599 = vpop.permute.xlu0 %598
    %600 = vrot.lane.b32.xlu0 %v592, 126
    %v601 = vpop.permute.xlu0 %600
    %602 = vrot.lane.b32.xlu0 %v595, 126
    %v603 = vpop.permute.xlu0 %602
    %604 = vrot.lane.b32.xlu0 %v597, 126
    %v605 = vpop.permute.xlu0 %604
    %v610 = vadd.f32 %v530, %v599
    %v611 = vadd.f32 %v531, %v601
    %v612 = vadd.f32 %v532, %v603
    %v613 = vadd.f32 %v533, %v605
    %s614 = sld [smem:[#allocation5 + $0x8]]
    %v615 = vstv %s614
    %v616 = vmul.f32 %v615, %v74
    %v617 = vmul.f32 %v615, %v75
    %v618 = vmul.f32 %v615, %v76
    %v619 = vmul.f32 %v615, %v77
    %v620 = vmul.f32 %v615, %v78
    %v621 = vmul.f32 %v615, %v79
    %v628 = vrot.slane %v616, 2
    %v629 = vrot.slane %v617, 2
    %v630 = vsel %vm443, %v628, %v629
    %v631 = vrot.slane %v618, 2
    %v632 = vsel %vm443, %v629, %v631
    %v633 = vrot.slane %v619, 2
    %v634 = vrot.slane %v620, 2
    %v635 = vsel %vm443, %v633, %v634
    %v636 = vrot.slane %v621, 2
    %v637 = vsel %vm443, %v634, %v636
    %638 = vrot.lane.b32.xlu0 %v630, 126
    %v639 = vpop.permute.xlu0 %638
    %640 = vrot.lane.b32.xlu0 %v632, 126
    %v641 = vpop.permute.xlu0 %640
    %642 = vrot.lane.b32.xlu0 %v635, 126
    %v643 = vpop.permute.xlu0 %642
    %644 = vrot.lane.b32.xlu0 %v637, 126
    %v645 = vpop.permute.xlu0 %644
    %v650 = vadd.f32 %v570, %v639
    %v651 = vadd.f32 %v571, %v641
    %v652 = vadd.f32 %v572, %v643
    %v653 = vadd.f32 %v573, %v645
    %s654 = scalar_lea.vmem %s4, 24
    %v655 = vld [vmem:[%s654] sm:$0xff]
    %v656 = vld [vmem:[%s654 + $0x8] sm:$0xff]
    %v657 = vld [vmem:[%s654 + $0x10] sm:$0x3]
    %v658 = vld [vmem:[%s654 + $0x30] sm:$0xff]
    %v659 = vld [vmem:[%s654 + $0x38] sm:$0xff]
    %v660 = vld [vmem:[%s654 + $0x40] sm:$0x3]
    %s661 = sld [smem:[#allocation2 + $0x9]]
    %v662 = vstv %s661
    %v663 = vmul.f32 %v662, %v655
    %v664 = vmul.f32 %v662, %v656
    %v665 = vmul.f32 %v662, %v658
    %v666 = vmul.f32 %v662, %v659
    %v667 = vadd.f32 %v610, %v663
    %v668 = vadd.f32 %v611, %v664
    %v669 = vadd.f32 %v612, %v665
    %v670 = vadd.f32 %v613, %v666
    %s671 = sld [smem:[#allocation5 + $0x9]]
    %v672 = vstv %s671
    %v673 = vmul.f32 %v672, %v655
    %v674 = vmul.f32 %v672, %v656
    %v675 = vmul.f32 %v672, %v658
    %v676 = vmul.f32 %v672, %v659
    %v677 = vadd.f32 %v650, %v673
    %v678 = vadd.f32 %v651, %v674
    %v679 = vadd.f32 %v652, %v675
    %v680 = vadd.f32 %v653, %v676
    %s681 = sld [smem:[#allocation2 + $0xa]]
    %v682 = vstv %s681
    %v683 = vmul.f32 %v682, %v655
    %v684 = vmul.f32 %v682, %v656
    %v685 = vmul.f32 %v682, %v658
    %v686 = vmul.f32 %v682, %v659
    %691 = vrot.lane.b32.xlu0 %v683, 127
    %v692 = vpop.permute.xlu0 %691
    %693 = vrot.lane.b32.xlu0 %v684, 127
    %v694 = vpop.permute.xlu0 %693
    %695 = vrot.lane.b32.xlu0 %v685, 127
    %v696 = vpop.permute.xlu0 %695
    %697 = vrot.lane.b32.xlu0 %v686, 127
    %v698 = vpop.permute.xlu0 %697
    %v703 = vadd.f32 %v667, %v692
    %v704 = vadd.f32 %v668, %v694
    %v705 = vadd.f32 %v669, %v696
    %v706 = vadd.f32 %v670, %v698
    %s707 = sld [smem:[#allocation5 + $0xa]]
    %v708 = vstv %s707
    %v709 = vmul.f32 %v708, %v655
    %v710 = vmul.f32 %v708, %v656
    %v711 = vmul.f32 %v708, %v658
    %v712 = vmul.f32 %v708, %v659
    %717 = vrot.lane.b32.xlu0 %v709, 127
    %v718 = vpop.permute.xlu0 %717
    %719 = vrot.lane.b32.xlu0 %v710, 127
    %v720 = vpop.permute.xlu0 %719
    %721 = vrot.lane.b32.xlu0 %v711, 127
    %v722 = vpop.permute.xlu0 %721
    %723 = vrot.lane.b32.xlu0 %v712, 127
    %v724 = vpop.permute.xlu0 %723
    %v729 = vadd.f32 %v677, %v718
    %v730 = vadd.f32 %v678, %v720
    %v731 = vadd.f32 %v679, %v722
    %v732 = vadd.f32 %v680, %v724
    %s733 = sld [smem:[#allocation2 + $0xb]]
    %v734 = vstv %s733
    %v735 = vmul.f32 %v734, %v655
    %v736 = vmul.f32 %v734, %v656
    %v737 = vmul.f32 %v734, %v658
    %v738 = vmul.f32 %v734, %v659
    %743 = vrot.lane.b32.xlu0 %v735, 126
    %v744 = vpop.permute.xlu0 %743
    %745 = vrot.lane.b32.xlu0 %v736, 126
    %v746 = vpop.permute.xlu0 %745
    %747 = vrot.lane.b32.xlu0 %v737, 126
    %v748 = vpop.permute.xlu0 %747
    %749 = vrot.lane.b32.xlu0 %v738, 126
    %v750 = vpop.permute.xlu0 %749
    %v755 = vadd.f32 %v703, %v744
    %v756 = vadd.f32 %v704, %v746
    %v757 = vadd.f32 %v705, %v748
    %v758 = vadd.f32 %v706, %v750
    %s759 = sld [smem:[#allocation5 + $0xb]]
    %v760 = vstv %s759
    %v761 = vmul.f32 %v760, %v655
    %v762 = vmul.f32 %v760, %v656
    %v763 = vmul.f32 %v760, %v658
    %v764 = vmul.f32 %v760, %v659
    %769 = vrot.lane.b32.xlu0 %v761, 126
    %v770 = vpop.permute.xlu0 %769
    %771 = vrot.lane.b32.xlu0 %v762, 126
    %v772 = vpop.permute.xlu0 %771
    %773 = vrot.lane.b32.xlu0 %v763, 126
    %v774 = vpop.permute.xlu0 %773
    %775 = vrot.lane.b32.xlu0 %v764, 126
    %v776 = vpop.permute.xlu0 %775
    %v781 = vadd.f32 %v729, %v770
    %v782 = vadd.f32 %v730, %v772
    %v783 = vadd.f32 %v731, %v774
    %v784 = vadd.f32 %v732, %v776
    %s785 = sld [smem:[#allocation2 + $0xc]]
    %v786 = vstv %s785
    %v787 = vmul.f32 %v786, %v655
    %v788 = vmul.f32 %v786, %v656
    %v789 = vmul.f32 %v786, %v657
    %v790 = vmul.f32 %v786, %v658
    %v791 = vmul.f32 %v786, %v659
    %v792 = vmul.f32 %v786, %v660
    %v799 = vrot.slane %v787, 1
    %v800 = vrot.slane %v788, 1
    %v801 = vsel %vm218, %v799, %v800
    %v802 = vrot.slane %v789, 1
    %v803 = vsel %vm218, %v800, %v802
    %v804 = vrot.slane %v790, 1
    %v805 = vrot.slane %v791, 1
    %v806 = vsel %vm218, %v804, %v805
    %v807 = vrot.slane %v792, 1
    %v808 = vsel %vm218, %v805, %v807
    %v813 = vadd.f32 %v755, %v801
    %v814 = vadd.f32 %v756, %v803
    %v815 = vadd.f32 %v757, %v806
    %v816 = vadd.f32 %v758, %v808
    %s817 = sld [smem:[#allocation5 + $0xc]]
    %v818 = vstv %s817
    %v819 = vmul.f32 %v818, %v655
    %v820 = vmul.f32 %v818, %v656
    %v821 = vmul.f32 %v818, %v657
    %v822 = vmul.f32 %v818, %v658
    %v823 = vmul.f32 %v818, %v659
    %v824 = vmul.f32 %v818, %v660
    %v831 = vrot.slane %v819, 1
    %v832 = vrot.slane %v820, 1
    %v833 = vsel %vm218, %v831, %v832
    %v834 = vrot.slane %v821, 1
    %v835 = vsel %vm218, %v832, %v834
    %v836 = vrot.slane %v822, 1
    %v837 = vrot.slane %v823, 1
    %v838 = vsel %vm218, %v836, %v837
    %v839 = vrot.slane %v824, 1
    %v840 = vsel %vm218, %v837, %v839
    %v845 = vadd.f32 %v781, %v833
    %v846 = vadd.f32 %v782, %v835
    %v847 = vadd.f32 %v783, %v838
    %v848 = vadd.f32 %v784, %v840
    %s849 = sld [smem:[#allocation2 + $0xd]]
    %v850 = vstv %s849
    %v851 = vmul.f32 %v850, %v655
    %v852 = vmul.f32 %v850, %v656
    %v853 = vmul.f32 %v850, %v657
    %v854 = vmul.f32 %v850, %v658
    %v855 = vmul.f32 %v850, %v659
    %v856 = vmul.f32 %v850, %v660
    %v863 = vrot.slane %v851, 1
    %v864 = vrot.slane %v852, 1
    %v865 = vsel %vm218, %v863, %v864
    %v866 = vrot.slane %v853, 1
    %v867 = vsel %vm218, %v864, %v866
    %v868 = vrot.slane %v854, 1
    %v869 = vrot.slane %v855, 1
    %v870 = vsel %vm218, %v868, %v869
    %v871 = vrot.slane %v856, 1
    %v872 = vsel %vm218, %v869, %v871
    %873 = vrot.lane.b32.xlu0 %v865, 127
    %v874 = vpop.permute.xlu0 %873
    %875 = vrot.lane.b32.xlu0 %v867, 127
    %v876 = vpop.permute.xlu0 %875
    %877 = vrot.lane.b32.xlu0 %v870, 127
    %v878 = vpop.permute.xlu0 %877
    %879 = vrot.lane.b32.xlu0 %v872, 127
    %v880 = vpop.permute.xlu0 %879
    %v885 = vadd.f32 %v813, %v874
    %v886 = vadd.f32 %v814, %v876
    %v887 = vadd.f32 %v815, %v878
    %v888 = vadd.f32 %v816, %v880
    %s889 = sld [smem:[#allocation5 + $0xd]]
    %v890 = vstv %s889
    %v891 = vmul.f32 %v890, %v655
    %v892 = vmul.f32 %v890, %v656
    %v893 = vmul.f32 %v890, %v657
    %v894 = vmul.f32 %v890, %v658
    %v895 = vmul.f32 %v890, %v659
    %v896 = vmul.f32 %v890, %v660
    %v903 = vrot.slane %v891, 1
    %v904 = vrot.slane %v892, 1
    %v905 = vsel %vm218, %v903, %v904
    %v906 = vrot.slane %v893, 1
    %v907 = vsel %vm218, %v904, %v906
    %v908 = vrot.slane %v894, 1
    %v909 = vrot.slane %v895, 1
    %v910 = vsel %vm218, %v908, %v909
    %v911 = vrot.slane %v896, 1
    %v912 = vsel %vm218, %v909, %v911
    %913 = vrot.lane.b32.xlu0 %v905, 127
    %v914 = vpop.permute.xlu0 %913
    %915 = vrot.lane.b32.xlu0 %v907, 127
    %v916 = vpop.permute.xlu0 %915
    %917 = vrot.lane.b32.xlu0 %v910, 127
    %v918 = vpop.permute.xlu0 %917
    %919 = vrot.lane.b32.xlu0 %v912, 127
    %v920 = vpop.permute.xlu0 %919
    %v925 = vadd.f32 %v845, %v914
    %v926 = vadd.f32 %v846, %v916
    %v927 = vadd.f32 %v847, %v918
    %v928 = vadd.f32 %v848, %v920
    %s929 = sld [smem:[#allocation2 + $0xe]]
    %v930 = vstv %s929
    %v931 = vmul.f32 %v930, %v655
    %v932 = vmul.f32 %v930, %v656
    %v933 = vmul.f32 %v930, %v657
    %v934 = vmul.f32 %v930, %v658
    %v935 = vmul.f32 %v930, %v659
    %v936 = vmul.f32 %v930, %v660
    %v943 = vrot.slane %v931, 1
    %v944 = vrot.slane %v932, 1
    %v945 = vsel %vm218, %v943, %v944
    %v946 = vrot.slane %v933, 1
    %v947 = vsel %vm218, %v944, %v946
    %v948 = vrot.slane %v934, 1
    %v949 = vrot.slane %v935, 1
    %v950 = vsel %vm218, %v948, %v949
    %v951 = vrot.slane %v936, 1
    %v952 = vsel %vm218, %v949, %v951
    %953 = vrot.lane.b32.xlu0 %v945, 126
    %v954 = vpop.permute.xlu0 %953
    %955 = vrot.lane.b32.xlu0 %v947, 126
    %v956 = vpop.permute.xlu0 %955
    %957 = vrot.lane.b32.xlu0 %v950, 126
    %v958 = vpop.permute.xlu0 %957
    %959 = vrot.lane.b32.xlu0 %v952, 126
    %v960 = vpop.permute.xlu0 %959
    %v965 = vadd.f32 %v885, %v954
    %v966 = vadd.f32 %v886, %v956
    %v967 = vadd.f32 %v887, %v958
    %v968 = vadd.f32 %v888, %v960
    %s969 = sld [smem:[#allocation5 + $0xe]]
    %v970 = vstv %s969
    %v971 = vmul.f32 %v970, %v655
    %v972 = vmul.f32 %v970, %v656
    %v973 = vmul.f32 %v970, %v657
    %v974 = vmul.f32 %v970, %v658
    %v975 = vmul.f32 %v970, %v659
    %v976 = vmul.f32 %v970, %v660
    %v983 = vrot.slane %v971, 1
    %v984 = vrot.slane %v972, 1
    %v985 = vsel %vm218, %v983, %v984
    %v986 = vrot.slane %v973, 1
    %v987 = vsel %vm218, %v984, %v986
    %v988 = vrot.slane %v974, 1
    %v989 = vrot.slane %v975, 1
    %v990 = vsel %vm218, %v988, %v989
    %v991 = vrot.slane %v976, 1
    %v992 = vsel %vm218, %v989, %v991
    %993 = vrot.lane.b32.xlu0 %v985, 126
    %v994 = vpop.permute.xlu0 %993
    %995 = vrot.lane.b32.xlu0 %v987, 126
    %v996 = vpop.permute.xlu0 %995
    %997 = vrot.lane.b32.xlu0 %v990, 126
    %v998 = vpop.permute.xlu0 %997
    %999 = vrot.lane.b32.xlu0 %v992, 126
    %v1000 = vpop.permute.xlu0 %999
    %v1005 = vadd.f32 %v925, %v994
    %v1006 = vadd.f32 %v926, %v996
    %v1007 = vadd.f32 %v927, %v998
    %v1008 = vadd.f32 %v928, %v1000
    %s1009 = sld [smem:[#allocation2 + $0xf]]
    %v1010 = vstv %s1009
    %v1011 = vmul.f32 %v1010, %v655
    %v1012 = vmul.f32 %v1010, %v656
    %v1013 = vmul.f32 %v1010, %v657
    %v1014 = vmul.f32 %v1010, %v658
    %v1015 = vmul.f32 %v1010, %v659
    %v1016 = vmul.f32 %v1010, %v660
    %v1023 = vrot.slane %v1011, 2
    %v1024 = vrot.slane %v1012, 2
    %v1025 = vsel %vm443, %v1023, %v1024
    %v1026 = vrot.slane %v1013, 2
    %v1027 = vsel %vm443, %v1024, %v1026
    %v1028 = vrot.slane %v1014, 2
    %v1029 = vrot.slane %v1015, 2
    %v1030 = vsel %vm443, %v1028, %v1029
    %v1031 = vrot.slane %v1016, 2
    %v1032 = vsel %vm443, %v1029, %v1031
    %v1037 = vadd.f32 %v965, %v1025
    %v1038 = vadd.f32 %v966, %v1027
    %v1039 = vadd.f32 %v967, %v1030
    %v1040 = vadd.f32 %v968, %v1032
    %s1041 = sld [smem:[#allocation5 + $0xf]]
    %v1042 = vstv %s1041
    %v1043 = vmul.f32 %v1042, %v655
    %v1044 = vmul.f32 %v1042, %v656
    %v1045 = vmul.f32 %v1042, %v657
    %v1046 = vmul.f32 %v1042, %v658
    %v1047 = vmul.f32 %v1042, %v659
    %v1048 = vmul.f32 %v1042, %v660
    %v1055 = vrot.slane %v1043, 2
    %v1056 = vrot.slane %v1044, 2
    %v1057 = vsel %vm443, %v1055, %v1056
    %v1058 = vrot.slane %v1045, 2
    %v1059 = vsel %vm443, %v1056, %v1058
    %v1060 = vrot.slane %v1046, 2
    %v1061 = vrot.slane %v1047, 2
    %v1062 = vsel %vm443, %v1060, %v1061
    %v1063 = vrot.slane %v1048, 2
    %v1064 = vsel %vm443, %v1061, %v1063
    %v1069 = vadd.f32 %v1005, %v1057
    %v1070 = vadd.f32 %v1006, %v1059
    %v1071 = vadd.f32 %v1007, %v1062
    %v1072 = vadd.f32 %v1008, %v1064
    %s1073 = sld [smem:[#allocation2 + $0x10]]
    %v1074 = vstv %s1073
    %v1075 = vmul.f32 %v1074, %v655
    %v1076 = vmul.f32 %v1074, %v656
    %v1077 = vmul.f32 %v1074, %v657
    %v1078 = vmul.f32 %v1074, %v658
    %v1079 = vmul.f32 %v1074, %v659
    %v1080 = vmul.f32 %v1074, %v660
    %v1087 = vrot.slane %v1075, 2
    %v1088 = vrot.slane %v1076, 2
    %v1089 = vsel %vm443, %v1087, %v1088
    %v1090 = vrot.slane %v1077, 2
    %v1091 = vsel %vm443, %v1088, %v1090
    %v1092 = vrot.slane %v1078, 2
    %v1093 = vrot.slane %v1079, 2
    %v1094 = vsel %vm443, %v1092, %v1093
    %v1095 = vrot.slane %v1080, 2
    %v1096 = vsel %vm443, %v1093, %v1095
    %1097 = vrot.lane.b32.xlu0 %v1089, 127
    %v1098 = vpop.permute.xlu0 %1097
    %1099 = vrot.lane.b32.xlu0 %v1091, 127
    %v1100 = vpop.permute.xlu0 %1099
    %1101 = vrot.lane.b32.xlu0 %v1094, 127
    %v1102 = vpop.permute.xlu0 %1101
    %1103 = vrot.lane.b32.xlu0 %v1096, 127
    %v1104 = vpop.permute.xlu0 %1103
    %v1109 = vadd.f32 %v1037, %v1098
    %v1110 = vadd.f32 %v1038, %v1100
    %v1111 = vadd.f32 %v1039, %v1102
    %v1112 = vadd.f32 %v1040, %v1104
    %s1113 = sld [smem:[#allocation5 + $0x10]]
    %v1114 = vstv %s1113
    %v1115 = vmul.f32 %v1114, %v655
    %v1116 = vmul.f32 %v1114, %v656
    %v1117 = vmul.f32 %v1114, %v657
    %v1118 = vmul.f32 %v1114, %v658
    %v1119 = vmul.f32 %v1114, %v659
    %v1120 = vmul.f32 %v1114, %v660
    %v1127 = vrot.slane %v1115, 2
    %v1128 = vrot.slane %v1116, 2
    %v1129 = vsel %vm443, %v1127, %v1128
    %v1130 = vrot.slane %v1117, 2
    %v1131 = vsel %vm443, %v1128, %v1130
    %v1132 = vrot.slane %v1118, 2
    %v1133 = vrot.slane %v1119, 2
    %v1134 = vsel %vm443, %v1132, %v1133
    %v1135 = vrot.slane %v1120, 2
    %v1136 = vsel %vm443, %v1133, %v1135
    %1137 = vrot.lane.b32.xlu0 %v1129, 127
    %v1138 = vpop.permute.xlu0 %1137
    %1139 = vrot.lane.b32.xlu0 %v1131, 127
    %v1140 = vpop.permute.xlu0 %1139
    %1141 = vrot.lane.b32.xlu0 %v1134, 127
    %v1142 = vpop.permute.xlu0 %1141
    %1143 = vrot.lane.b32.xlu0 %v1136, 127
    %v1144 = vpop.permute.xlu0 %1143
    %v1149 = vadd.f32 %v1069, %v1138
    %v1150 = vadd.f32 %v1070, %v1140
    %v1151 = vadd.f32 %v1071, %v1142
    %v1152 = vadd.f32 %v1072, %v1144
    %s1153 = sld [smem:[#allocation2 + $0x11]]
    %v1154 = vstv %s1153
    %v1155 = vmul.f32 %v1154, %v655
    %v1156 = vmul.f32 %v1154, %v656
    %v1157 = vmul.f32 %v1154, %v657
    %v1158 = vmul.f32 %v1154, %v658
    %v1159 = vmul.f32 %v1154, %v659
    %v1160 = vmul.f32 %v1154, %v660
    %v1167 = vrot.slane %v1155, 2
    %v1168 = vrot.slane %v1156, 2
    %v1169 = vsel %vm443, %v1167, %v1168
    %v1170 = vrot.slane %v1157, 2
    %v1171 = vsel %vm443, %v1168, %v1170
    %v1172 = vrot.slane %v1158, 2
    %v1173 = vrot.slane %v1159, 2
    %v1174 = vsel %vm443, %v1172, %v1173
    %v1175 = vrot.slane %v1160, 2
    %v1176 = vsel %vm443, %v1173, %v1175
    %1177 = vrot.lane.b32.xlu0 %v1169, 126
    %v1178 = vpop.permute.xlu0 %1177
    %1179 = vrot.lane.b32.xlu0 %v1171, 126
    %v1180 = vpop.permute.xlu0 %1179
    %1181 = vrot.lane.b32.xlu0 %v1174, 126
    %v1182 = vpop.permute.xlu0 %1181
    %1183 = vrot.lane.b32.xlu0 %v1176, 126
    %v1184 = vpop.permute.xlu0 %1183
    %v1189 = vadd.f32 %v1109, %v1178
    %v1190 = vadd.f32 %v1110, %v1180
    %v1191 = vadd.f32 %v1111, %v1182
    %v1192 = vadd.f32 %v1112, %v1184
    %s1193 = sld [smem:[#allocation5 + $0x11]]
    %v1194 = vstv %s1193
    %v1195 = vmul.f32 %v1194, %v655
    %v1196 = vmul.f32 %v1194, %v656
    %v1197 = vmul.f32 %v1194, %v657
    %v1198 = vmul.f32 %v1194, %v658
    %v1199 = vmul.f32 %v1194, %v659
    %v1200 = vmul.f32 %v1194, %v660
    %v1207 = vrot.slane %v1195, 2
    %v1208 = vrot.slane %v1196, 2
    %v1209 = vsel %vm443, %v1207, %v1208
    %v1210 = vrot.slane %v1197, 2
    %v1211 = vsel %vm443, %v1208, %v1210
    %v1212 = vrot.slane %v1198, 2
    %v1213 = vrot.slane %v1199, 2
    %v1214 = vsel %vm443, %v1212, %v1213
    %v1215 = vrot.slane %v1200, 2
    %v1216 = vsel %vm443, %v1213, %v1215
    %1217 = vrot.lane.b32.xlu0 %v1209, 126
    %v1218 = vpop.permute.xlu0 %1217
    %1219 = vrot.lane.b32.xlu0 %v1211, 126
    %v1220 = vpop.permute.xlu0 %1219
    %1221 = vrot.lane.b32.xlu0 %v1214, 126
    %v1222 = vpop.permute.xlu0 %1221
    %1223 = vrot.lane.b32.xlu0 %v1216, 126
    %v1224 = vpop.permute.xlu0 %1223
    %v1229 = vadd.f32 %v1149, %v1218
    %v1230 = vadd.f32 %v1150, %v1220
    %v1231 = vadd.f32 %v1151, %v1222
    %v1232 = vadd.f32 %v1152, %v1224
    %s1233 = sld [smem:[#allocation7]]
    %v1234 = vstv %s1233
    %v1235 = vadd.f32 %v1189, %v1234
    %v1236 = vadd.f32 %v1190, %v1234
    %v1237 = vadd.f32 %v1191, %v1234
    %v1238 = vadd.f32 %v1192, %v1234
    %s1239 = sld [smem:[#allocation8]]
    %v1240 = vstv %s1239
    %v1241 = vadd.f32 %v1229, %v1240
    %v1242 = vadd.f32 %v1230, %v1240
    %v1243 = vadd.f32 %v1231, %v1240
    %v1244 = vadd.f32 %v1232, %v1240
    %v1245 = vld [vmem:[%s5] sm:$0xff]
    %v1246 = vld [vmem:[%s5 + $0x8] sm:$0xff]
    %v1247 = vld [vmem:[%s5 + $0x20] sm:$0xff]
    %v1248 = vld [vmem:[%s5 + $0x28] sm:$0xff]
    %v1249 = vsub.f32 %v1245, %v1235
    %v1250 = vsub.f32 %v1246, %v1236
    %v1251 = vsub.f32 %v1247, %v1237
    %v1252 = vsub.f32 %v1248, %v1238
    %v1253 = vsub.f32 0.0, %v1241
    %v1254 = vsub.f32 0.0, %v1242
    %v1255 = vsub.f32 0.0, %v1243
    %v1256 = vsub.f32 0.0, %v1244
    %v1257 = vmul.f32 %v1253, 1.442695
    %v1258 = vpow.pop %v1257
    %v1259 = vmul.f32 %v1254, 1.442695
    %v1260 = vpow.pop %v1259
    %v1261 = vmul.f32 %v1255, 1.442695
    %v1262 = vpow.pop %v1261
    %v1263 = vmul.f32 %v1256, 1.442695
    %v1264 = vpow.pop %v1263
    %v1265 = vmul.f32 %v1249, %v1258
    %v1266 = vmul.f32 %v1250, %v1260
    %v1267 = vmul.f32 %v1251, %v1262
    %v1268 = vmul.f32 %v1252, %v1264
    %vm1269 = vcmask 130048
    %1270 = vst.msk [vmem:[#allocation10] sm:$0xff] %vm1269, %v1265
    %1271 = vst.msk [vmem:[#allocation10 + $0x8] sm:$0xff] %vm1269, %v1266
    %1272 = vst.msk [vmem:[#allocation10 + $0x20] sm:$0xff] %vm1269, %v1267
    %1273 = vst.msk [vmem:[#allocation10 + $0x28] sm:$0xff] %vm1269, %v1268
    %v1274 = vsel %vm1269, %v1241, 0.0
    %1275 = vadd.xlane.f32.xlu0 %v1274
    %v1276 = vpop.xlane.xlu0 %1275
    %v1277 = vsel %vm1269, %v1242, 0.0
    %1278 = vadd.xlane.f32.xlu0 %v1277
    %v1279 = vpop.xlane.xlu0 %1278
    %v1280 = vsel %vm1269, %v1243, 0.0
    %1281 = vadd.xlane.f32.xlu0 %v1280
    %v1282 = vpop.xlane.xlu0 %1281
    %v1283 = vsel %vm1269, %v1244, 0.0
    %1284 = vadd.xlane.f32.xlu0 %v1283
    %v1285 = vpop.xlane.xlu0 %1284
    %v1290 = vlaneseq
    %v1291 = vand.u32 %v1290, 127
    %v1292 = vperm.slane %v1276, %v1291
    %v1293 = vadd.s32 %v1291, 4294967288
    %v1294 = vperm.slane %v1279, %v1293
    %vm1295 = vcmask 130112
    %v1296 = vsel %vm1295, %v1294, %v1292
    %v1297 = vperm.slane %v1282, %v1291
    %v1298 = vperm.slane %v1285, %v1293
    %v1299 = vsel %vm1295, %v1298, %v1297
    %vm1300 = vcmask 1041409
    %v1301 = vsel %vm1300, %v1299, %v1296
    %vm1303 = vcmask 123904
    %v1304 = vsel %vm1303, %v1301, 0.0
    %1305 = vadd.xlane.f32.xlu0 %v1304
    %v1306 = vpop.xlane.xlu0 %1305
    %v1307 = vsub.f32 0.0, %v1306
    %v1308 = vld [vmem:[%s4] sm:$0xff]
    %v1309 = vld [vmem:[%s4 + $0x8] sm:$0xff]
    %v1310 = vld [vmem:[%s4 + $0x10] sm:$0x3]
    %v1311 = vld [vmem:[%s4 + $0x30] sm:$0xff]
    %v1312 = vld [vmem:[%s4 + $0x38] sm:$0xff]
    %v1313 = vld [vmem:[%s4 + $0x40] sm:$0x3]
    %s1314 = sld [smem:[#allocation2 + $0x12]]
    %v1315 = vstv %s1314
    %v1316 = vmul.f32 %v1315, %v1308
    %v1317 = vmul.f32 %v1315, %v1309
    %v1318 = vmul.f32 %v1315, %v1311
    %v1319 = vmul.f32 %v1315, %v1312
    %v1320 = vadd.f32 %v1316, 0.0
    %v1321 = vadd.f32 %v1317, 0.0
    %v1322 = vadd.f32 %v1318, 0.0
    %v1323 = vadd.f32 %v1319, 0.0
    %s1324 = sld [smem:[#allocation5 + $0x12]]
    %v1325 = vstv %s1324
    %v1326 = vmul.f32 %v1325, %v1308
    %v1327 = vmul.f32 %v1325, %v1309
    %v1328 = vmul.f32 %v1325, %v1311
    %v1329 = vmul.f32 %v1325, %v1312
    %v1330 = vadd.f32 %v1326, 0.0
    %v1331 = vadd.f32 %v1327, 0.0
    %v1332 = vadd.f32 %v1328, 0.0
    %v1333 = vadd.f32 %v1329, 0.0
    %s1334 = sld [smem:[#allocation2 + $0x13]]
    %v1335 = vstv %s1334
    %v1336 = vmul.f32 %v1335, %v1308
    %v1337 = vmul.f32 %v1335, %v1309
    %v1338 = vmul.f32 %v1335, %v1311
    %v1339 = vmul.f32 %v1335, %v1312
    %1344 = vrot.lane.b32.xlu0 %v1336, 127
    %v1345 = vpop.permute.xlu0 %1344
    %1346 = vrot.lane.b32.xlu0 %v1337, 127
    %v1347 = vpop.permute.xlu0 %1346
    %1348 = vrot.lane.b32.xlu0 %v1338, 127
    %v1349 = vpop.permute.xlu0 %1348
    %1350 = vrot.lane.b32.xlu0 %v1339, 127
    %v1351 = vpop.permute.xlu0 %1350
    %v1356 = vadd.f32 %v1320, %v1345
    %v1357 = vadd.f32 %v1321, %v1347
    %v1358 = vadd.f32 %v1322, %v1349
    %v1359 = vadd.f32 %v1323, %v1351
    %s1360 = sld [smem:[#allocation5 + $0x13]]
    %v1361 = vstv %s1360
    %v1362 = vmul.f32 %v1361, %v1308
    %v1363 = vmul.f32 %v1361, %v1309
    %v1364 = vmul.f32 %v1361, %v1311
    %v1365 = vmul.f32 %v1361, %v1312
    %1370 = vrot.lane.b32.xlu0 %v1362, 127
    %v1371 = vpop.permute.xlu0 %1370
    %1372 = vrot.lane.b32.xlu0 %v1363, 127
    %v1373 = vpop.permute.xlu0 %1372
    %1374 = vrot.lane.b32.xlu0 %v1364, 127
    %v1375 = vpop.permute.xlu0 %1374
    %1376 = vrot.lane.b32.xlu0 %v1365, 127
    %v1377 = vpop.permute.xlu0 %1376
    %v1382 = vadd.f32 %v1330, %v1371
    %v1383 = vadd.f32 %v1331, %v1373
    %v1384 = vadd.f32 %v1332, %v1375
    %v1385 = vadd.f32 %v1333, %v1377
    %s1386 = sld [smem:[#allocation2 + $0x14]]
    %v1387 = vstv %s1386
    %v1388 = vmul.f32 %v1387, %v1308
    %v1389 = vmul.f32 %v1387, %v1309
    %v1390 = vmul.f32 %v1387, %v1311
    %v1391 = vmul.f32 %v1387, %v1312
    %1396 = vrot.lane.b32.xlu0 %v1388, 126
    %v1397 = vpop.permute.xlu0 %1396
    %1398 = vrot.lane.b32.xlu0 %v1389, 126
    %v1399 = vpop.permute.xlu0 %1398
    %1400 = vrot.lane.b32.xlu0 %v1390, 126
    %v1401 = vpop.permute.xlu0 %1400
    %1402 = vrot.lane.b32.xlu0 %v1391, 126
    %v1403 = vpop.permute.xlu0 %1402
    %v1408 = vadd.f32 %v1356, %v1397
    %v1409 = vadd.f32 %v1357, %v1399
    %v1410 = vadd.f32 %v1358, %v1401
    %v1411 = vadd.f32 %v1359, %v1403
    %s1412 = sld [smem:[#allocation5 + $0x14]]
    %v1413 = vstv %s1412
    %v1414 = vmul.f32 %v1413, %v1308
    %v1415 = vmul.f32 %v1413, %v1309
    %v1416 = vmul.f32 %v1413, %v1311
    %v1417 = vmul.f32 %v1413, %v1312
    %1422 = vrot.lane.b32.xlu0 %v1414, 126
    %v1423 = vpop.permute.xlu0 %1422
    %1424 = vrot.lane.b32.xlu0 %v1415, 126
    %v1425 = vpop.permute.xlu0 %1424
    %1426 = vrot.lane.b32.xlu0 %v1416, 126
    %v1427 = vpop.permute.xlu0 %1426
    %1428 = vrot.lane.b32.xlu0 %v1417, 126
    %v1429 = vpop.permute.xlu0 %1428
    %v1434 = vadd.f32 %v1382, %v1423
    %v1435 = vadd.f32 %v1383, %v1425
    %v1436 = vadd.f32 %v1384, %v1427
    %v1437 = vadd.f32 %v1385, %v1429
    %s1438 = sld [smem:[#allocation2 + $0x15]]
    %v1439 = vstv %s1438
    %v1440 = vmul.f32 %v1439, %v1308
    %v1441 = vmul.f32 %v1439, %v1309
    %v1442 = vmul.f32 %v1439, %v1310
    %v1443 = vmul.f32 %v1439, %v1311
    %v1444 = vmul.f32 %v1439, %v1312
    %v1445 = vmul.f32 %v1439, %v1313
    %v1452 = vrot.slane %v1440, 1
    %v1453 = vrot.slane %v1441, 1
    %v1454 = vsel %vm218, %v1452, %v1453
    %v1455 = vrot.slane %v1442, 1
    %v1456 = vsel %vm218, %v1453, %v1455
    %v1457 = vrot.slane %v1443, 1
    %v1458 = vrot.slane %v1444, 1
    %v1459 = vsel %vm218, %v1457, %v1458
    %v1460 = vrot.slane %v1445, 1
    %v1461 = vsel %vm218, %v1458, %v1460
    %v1466 = vadd.f32 %v1408, %v1454
    %v1467 = vadd.f32 %v1409, %v1456
    %v1468 = vadd.f32 %v1410, %v1459
    %v1469 = vadd.f32 %v1411, %v1461
    %s1470 = sld [smem:[#allocation5 + $0x15]]
    %v1471 = vstv %s1470
    %v1472 = vmul.f32 %v1471, %v1308
    %v1473 = vmul.f32 %v1471, %v1309
    %v1474 = vmul.f32 %v1471, %v1310
    %v1475 = vmul.f32 %v1471, %v1311
    %v1476 = vmul.f32 %v1471, %v1312
    %v1477 = vmul.f32 %v1471, %v1313
    %v1484 = vrot.slane %v1472, 1
    %v1485 = vrot.slane %v1473, 1
    %v1486 = vsel %vm218, %v1484, %v1485
    %v1487 = vrot.slane %v1474, 1
    %v1488 = vsel %vm218, %v1485, %v1487
    %v1489 = vrot.slane %v1475, 1
    %v1490 = vrot.slane %v1476, 1
    %v1491 = vsel %vm218, %v1489, %v1490
    %v1492 = vrot.slane %v1477, 1
    %v1493 = vsel %vm218, %v1490, %v1492
    %v1498 = vadd.f32 %v1434, %v1486
    %v1499 = vadd.f32 %v1435, %v1488
    %v1500 = vadd.f32 %v1436, %v1491
    %v1501 = vadd.f32 %v1437, %v1493
    %s1502 = sld [smem:[#allocation2 + $0x16]]
    %v1503 = vstv %s1502
    %v1504 = vmul.f32 %v1503, %v1308
    %v1505 = vmul.f32 %v1503, %v1309
    %v1506 = vmul.f32 %v1503, %v1310
    %v1507 = vmul.f32 %v1503, %v1311
    %v1508 = vmul.f32 %v1503, %v1312
    %v1509 = vmul.f32 %v1503, %v1313
    %v1516 = vrot.slane %v1504, 1
    %v1517 = vrot.slane %v1505, 1
    %v1518 = vsel %vm218, %v1516, %v1517
    %v1519 = vrot.slane %v1506, 1
    %v1520 = vsel %vm218, %v1517, %v1519
    %v1521 = vrot.slane %v1507, 1
    %v1522 = vrot.slane %v1508, 1
    %v1523 = vsel %vm218, %v1521, %v1522
    %v1524 = vrot.slane %v1509, 1
    %v1525 = vsel %vm218, %v1522, %v1524
    %1526 = vrot.lane.b32.xlu0 %v1518, 127
    %v1527 = vpop.permute.xlu0 %1526
    %1528 = vrot.lane.b32.xlu0 %v1520, 127
    %v1529 = vpop.permute.xlu0 %1528
    %1530 = vrot.lane.b32.xlu0 %v1523, 127
    %v1531 = vpop.permute.xlu0 %1530
    %1532 = vrot.lane.b32.xlu0 %v1525, 127
    %v1533 = vpop.permute.xlu0 %1532
    %v1538 = vadd.f32 %v1466, %v1527
    %v1539 = vadd.f32 %v1467, %v1529
    %v1540 = vadd.f32 %v1468, %v1531
    %v1541 = vadd.f32 %v1469, %v1533
    %s1542 = sld [smem:[#allocation5 + $0x16]]
    %v1543 = vstv %s1542
    %v1544 = vmul.f32 %v1543, %v1308
    %v1545 = vmul.f32 %v1543, %v1309
    %v1546 = vmul.f32 %v1543, %v1310
    %v1547 = vmul.f32 %v1543, %v1311
    %v1548 = vmul.f32 %v1543, %v1312
    %v1549 = vmul.f32 %v1543, %v1313
    %v1556 = vrot.slane %v1544, 1
    %v1557 = vrot.slane %v1545, 1
    %v1558 = vsel %vm218, %v1556, %v1557
    %v1559 = vrot.slane %v1546, 1
    %v1560 = vsel %vm218, %v1557, %v1559
    %v1561 = vrot.slane %v1547, 1
    %v1562 = vrot.slane %v1548, 1
    %v1563 = vsel %vm218, %v1561, %v1562
    %v1564 = vrot.slane %v1549, 1
    %v1565 = vsel %vm218, %v1562, %v1564
    %1566 = vrot.lane.b32.xlu0 %v1558, 127
    %v1567 = vpop.permute.xlu0 %1566
    %1568 = vrot.lane.b32.xlu0 %v1560, 127
    %v1569 = vpop.permute.xlu0 %1568
    %1570 = vrot.lane.b32.xlu0 %v1563, 127
    %v1571 = vpop.permute.xlu0 %1570
    %1572 = vrot.lane.b32.xlu0 %v1565, 127
    %v1573 = vpop.permute.xlu0 %1572
    %v1578 = vadd.f32 %v1498, %v1567
    %v1579 = vadd.f32 %v1499, %v1569
    %v1580 = vadd.f32 %v1500, %v1571
    %v1581 = vadd.f32 %v1501, %v1573
    %s1582 = sld [smem:[#allocation2 + $0x17]]
    %v1583 = vstv %s1582
    %v1584 = vmul.f32 %v1583, %v1308
    %v1585 = vmul.f32 %v1583, %v1309
    %v1586 = vmul.f32 %v1583, %v1310
    %v1587 = vmul.f32 %v1583, %v1311
    %v1588 = vmul.f32 %v1583, %v1312
    %v1589 = vmul.f32 %v1583, %v1313
    %v1596 = vrot.slane %v1584, 1
    %v1597 = vrot.slane %v1585, 1
    %v1598 = vsel %vm218, %v1596, %v1597
    %v1599 = vrot.slane %v1586, 1
    %v1600 = vsel %vm218, %v1597, %v1599
    %v1601 = vrot.slane %v1587, 1
    %v1602 = vrot.slane %v1588, 1
    %v1603 = vsel %vm218, %v1601, %v1602
    %v1604 = vrot.slane %v1589, 1
    %v1605 = vsel %vm218, %v1602, %v1604
    %1606 = vrot.lane.b32.xlu0 %v1598, 126
    %v1607 = vpop.permute.xlu0 %1606
    %1608 = vrot.lane.b32.xlu0 %v1600, 126
    %v1609 = vpop.permute.xlu0 %1608
    %1610 = vrot.lane.b32.xlu0 %v1603, 126
    %v1611 = vpop.permute.xlu0 %1610
    %1612 = vrot.lane.b32.xlu0 %v1605, 126
    %v1613 = vpop.permute.xlu0 %1612
    %v1618 = vadd.f32 %v1538, %v1607
    %v1619 = vadd.f32 %v1539, %v1609
    %v1620 = vadd.f32 %v1540, %v1611
    %v1621 = vadd.f32 %v1541, %v1613
    %s1622 = sld [smem:[#allocation5 + $0x17]]
    %v1623 = vstv %s1622
    %v1624 = vmul.f32 %v1623, %v1308
    %v1625 = vmul.f32 %v1623, %v1309
    %v1626 = vmul.f32 %v1623, %v1310
    %v1627 = vmul.f32 %v1623, %v1311
    %v1628 = vmul.f32 %v1623, %v1312
    %v1629 = vmul.f32 %v1623, %v1313
    %v1636 = vrot.slane %v1624, 1
    %v1637 = vrot.slane %v1625, 1
    %v1638 = vsel %vm218, %v1636, %v1637
    %v1639 = vrot.slane %v1626, 1
    %v1640 = vsel %vm218, %v1637, %v1639
    %v1641 = vrot.slane %v1627, 1
    %v1642 = vrot.slane %v1628, 1
    %v1643 = vsel %vm218, %v1641, %v1642
    %v1644 = vrot.slane %v1629, 1
    %v1645 = vsel %vm218, %v1642, %v1644
    %1646 = vrot.lane.b32.xlu0 %v1638, 126
    %v1647 = vpop.permute.xlu0 %1646
    %1648 = vrot.lane.b32.xlu0 %v1640, 126
    %v1649 = vpop.permute.xlu0 %1648
    %1650 = vrot.lane.b32.xlu0 %v1643, 126
    %v1651 = vpop.permute.xlu0 %1650
    %1652 = vrot.lane.b32.xlu0 %v1645, 126
    %v1653 = vpop.permute.xlu0 %1652
    %v1658 = vadd.f32 %v1578, %v1647
    %v1659 = vadd.f32 %v1579, %v1649
    %v1660 = vadd.f32 %v1580, %v1651
    %v1661 = vadd.f32 %v1581, %v1653
    %s1662 = sld [smem:[#allocation2 + $0x18]]
    %v1663 = vstv %s1662
    %v1664 = vmul.f32 %v1663, %v1308
    %v1665 = vmul.f32 %v1663, %v1309
    %v1666 = vmul.f32 %v1663, %v1310
    %v1667 = vmul.f32 %v1663, %v1311
    %v1668 = vmul.f32 %v1663, %v1312
    %v1669 = vmul.f32 %v1663, %v1313
    %v1676 = vrot.slane %v1664, 2
    %v1677 = vrot.slane %v1665, 2
    %v1678 = vsel %vm443, %v1676, %v1677
    %v1679 = vrot.slane %v1666, 2
    %v1680 = vsel %vm443, %v1677, %v1679
    %v1681 = vrot.slane %v1667, 2
    %v1682 = vrot.slane %v1668, 2
    %v1683 = vsel %vm443, %v1681, %v1682
    %v1684 = vrot.slane %v1669, 2
    %v1685 = vsel %vm443, %v1682, %v1684
    %v1690 = vadd.f32 %v1618, %v1678
    %v1691 = vadd.f32 %v1619, %v1680
    %v1692 = vadd.f32 %v1620, %v1683
    %v1693 = vadd.f32 %v1621, %v1685
    %s1694 = sld [smem:[#allocation5 + $0x18]]
    %v1695 = vstv %s1694
    %v1696 = vmul.f32 %v1695, %v1308
    %v1697 = vmul.f32 %v1695, %v1309
    %v1698 = vmul.f32 %v1695, %v1310
    %v1699 = vmul.f32 %v1695, %v1311
    %v1700 = vmul.f32 %v1695, %v1312
    %v1701 = vmul.f32 %v1695, %v1313
    %v1708 = vrot.slane %v1696, 2
    %v1709 = vrot.slane %v1697, 2
    %v1710 = vsel %vm443, %v1708, %v1709
    %v1711 = vrot.slane %v1698, 2
    %v1712 = vsel %vm443, %v1709, %v1711
    %v1713 = vrot.slane %v1699, 2
    %v1714 = vrot.slane %v1700, 2
    %v1715 = vsel %vm443, %v1713, %v1714
    %v1716 = vrot.slane %v1701, 2
    %v1717 = vsel %vm443, %v1714, %v1716
    %v1722 = vadd.f32 %v1658, %v1710
    %v1723 = vadd.f32 %v1659, %v1712
    %v1724 = vadd.f32 %v1660, %v1715
    %v1725 = vadd.f32 %v1661, %v1717
    %s1726 = sld [smem:[#allocation2 + $0x19]]
    %v1727 = vstv %s1726
    %v1728 = vmul.f32 %v1727, %v1308
    %v1729 = vmul.f32 %v1727, %v1309
    %v1730 = vmul.f32 %v1727, %v1310
    %v1731 = vmul.f32 %v1727, %v1311
    %v1732 = vmul.f32 %v1727, %v1312
    %v1733 = vmul.f32 %v1727, %v1313
    %v1740 = vrot.slane %v1728, 2
    %v1741 = vrot.slane %v1729, 2
    %v1742 = vsel %vm443, %v1740, %v1741
    %v1743 = vrot.slane %v1730, 2
    %v1744 = vsel %vm443, %v1741, %v1743
    %v1745 = vrot.slane %v1731, 2
    %v1746 = vrot.slane %v1732, 2
    %v1747 = vsel %vm443, %v1745, %v1746
    %v1748 = vrot.slane %v1733, 2
    %v1749 = vsel %vm443, %v1746, %v1748
    %1750 = vrot.lane.b32.xlu0 %v1742, 127
    %v1751 = vpop.permute.xlu0 %1750
    %1752 = vrot.lane.b32.xlu0 %v1744, 127
    %v1753 = vpop.permute.xlu0 %1752
    %1754 = vrot.lane.b32.xlu0 %v1747, 127
    %v1755 = vpop.permute.xlu0 %1754
    %1756 = vrot.lane.b32.xlu0 %v1749, 127
    %v1757 = vpop.permute.xlu0 %1756
    %v1762 = vadd.f32 %v1690, %v1751
    %v1763 = vadd.f32 %v1691, %v1753
    %v1764 = vadd.f32 %v1692, %v1755
    %v1765 = vadd.f32 %v1693, %v1757
    %s1766 = sld [smem:[#allocation5 + $0x19]]
    %v1767 = vstv %s1766
    %v1768 = vmul.f32 %v1767, %v1308
    %v1769 = vmul.f32 %v1767, %v1309
    %v1770 = vmul.f32 %v1767, %v1310
    %v1771 = vmul.f32 %v1767, %v1311
    %v1772 = vmul.f32 %v1767, %v1312
    %v1773 = vmul.f32 %v1767, %v1313
    %v1780 = vrot.slane %v1768, 2
    %v1781 = vrot.slane %v1769, 2
    %v1782 = vsel %vm443, %v1780, %v1781
    %v1783 = vrot.slane %v1770, 2
    %v1784 = vsel %vm443, %v1781, %v1783
    %v1785 = vrot.slane %v1771, 2
    %v1786 = vrot.slane %v1772, 2
    %v1787 = vsel %vm443, %v1785, %v1786
    %v1788 = vrot.slane %v1773, 2
    %v1789 = vsel %vm443, %v1786, %v1788
    %1790 = vrot.lane.b32.xlu0 %v1782, 127
    %v1791 = vpop.permute.xlu0 %1790
    %1792 = vrot.lane.b32.xlu0 %v1784, 127
    %v1793 = vpop.permute.xlu0 %1792
    %1794 = vrot.lane.b32.xlu0 %v1787, 127
    %v1795 = vpop.permute.xlu0 %1794
    %1796 = vrot.lane.b32.xlu0 %v1789, 127
    %v1797 = vpop.permute.xlu0 %1796
    %v1802 = vadd.f32 %v1722, %v1791
    %v1803 = vadd.f32 %v1723, %v1793
    %v1804 = vadd.f32 %v1724, %v1795
    %v1805 = vadd.f32 %v1725, %v1797
    %s1806 = sld [smem:[#allocation2 + $0x1a]]
    %v1807 = vstv %s1806
    %v1808 = vmul.f32 %v1807, %v1308
    %v1809 = vmul.f32 %v1807, %v1309
    %v1810 = vmul.f32 %v1807, %v1310
    %v1811 = vmul.f32 %v1807, %v1311
    %v1812 = vmul.f32 %v1807, %v1312
    %v1813 = vmul.f32 %v1807, %v1313
    %v1820 = vrot.slane %v1808, 2
    %v1821 = vrot.slane %v1809, 2
    %v1822 = vsel %vm443, %v1820, %v1821
    %v1823 = vrot.slane %v1810, 2
    %v1824 = vsel %vm443, %v1821, %v1823
    %v1825 = vrot.slane %v1811, 2
    %v1826 = vrot.slane %v1812, 2
    %v1827 = vsel %vm443, %v1825, %v1826
    %v1828 = vrot.slane %v1813, 2
    %v1829 = vsel %vm443, %v1826, %v1828
    %1830 = vrot.lane.b32.xlu0 %v1822, 126
    %v1831 = vpop.permute.xlu0 %1830
    %1832 = vrot.lane.b32.xlu0 %v1824, 126
    %v1833 = vpop.permute.xlu0 %1832
    %1834 = vrot.lane.b32.xlu0 %v1827, 126
    %v1835 = vpop.permute.xlu0 %1834
    %1836 = vrot.lane.b32.xlu0 %v1829, 126
    %v1837 = vpop.permute.xlu0 %1836
    %v1842 = vadd.f32 %v1762, %v1831
    %v1843 = vadd.f32 %v1763, %v1833
    %v1844 = vadd.f32 %v1764, %v1835
    %v1845 = vadd.f32 %v1765, %v1837
    %s1846 = sld [smem:[#allocation5 + $0x1a]]
    %v1847 = vstv %s1846
    %v1848 = vmul.f32 %v1847, %v1308
    %v1849 = vmul.f32 %v1847, %v1309
    %v1850 = vmul.f32 %v1847, %v1310
    %v1851 = vmul.f32 %v1847, %v1311
    %v1852 = vmul.f32 %v1847, %v1312
    %v1853 = vmul.f32 %v1847, %v1313
    %v1860 = vrot.slane %v1848, 2
    %v1861 = vrot.slane %v1849, 2
    %v1862 = vsel %vm443, %v1860, %v1861
    %v1863 = vrot.slane %v1850, 2
    %v1864 = vsel %vm443, %v1861, %v1863
    %v1865 = vrot.slane %v1851, 2
    %v1866 = vrot.slane %v1852, 2
    %v1867 = vsel %vm443, %v1865, %v1866
    %v1868 = vrot.slane %v1853, 2
    %v1869 = vsel %vm443, %v1866, %v1868
    %1870 = vrot.lane.b32.xlu0 %v1862, 126
    %v1871 = vpop.permute.xlu0 %1870
    %1872 = vrot.lane.b32.xlu0 %v1864, 126
    %v1873 = vpop.permute.xlu0 %1872
    %1874 = vrot.lane.b32.xlu0 %v1867, 126
    %v1875 = vpop.permute.xlu0 %1874
    %1876 = vrot.lane.b32.xlu0 %v1869, 126
    %v1877 = vpop.permute.xlu0 %1876
    %v1882 = vadd.f32 %v1802, %v1871
    %v1883 = vadd.f32 %v1803, %v1873
    %v1884 = vadd.f32 %v1804, %v1875
    %v1885 = vadd.f32 %v1805, %v1877
    %v1886 = vld [vmem:[%s654] sm:$0xff]
    %v1887 = vld [vmem:[%s654 + $0x8] sm:$0xff]
    %v1888 = vld [vmem:[%s654 + $0x10] sm:$0x3]
    %v1889 = vld [vmem:[%s654 + $0x30] sm:$0xff]
    %v1890 = vld [vmem:[%s654 + $0x38] sm:$0xff]
    %v1891 = vld [vmem:[%s654 + $0x40] sm:$0x3]
    %s1892 = sld [smem:[#allocation2 + $0x1b]]
    %v1893 = vstv %s1892
    %v1894 = vmul.f32 %v1893, %v1886
    %v1895 = vmul.f32 %v1893, %v1887
    %v1896 = vmul.f32 %v1893, %v1889
    %v1897 = vmul.f32 %v1893, %v1890
    %v1898 = vadd.f32 %v1842, %v1894
    %v1899 = vadd.f32 %v1843, %v1895
    %v1900 = vadd.f32 %v1844, %v1896
    %v1901 = vadd.f32 %v1845, %v1897
    %s1902 = sld [smem:[#allocation5 + $0x1b]]
    %v1903 = vstv %s1902
    %v1904 = vmul.f32 %v1903, %v1886
    %v1905 = vmul.f32 %v1903, %v1887
    %v1906 = vmul.f32 %v1903, %v1889
    %v1907 = vmul.f32 %v1903, %v1890
    %v1908 = vadd.f32 %v1882, %v1904
    %v1909 = vadd.f32 %v1883, %v1905
    %v1910 = vadd.f32 %v1884, %v1906
    %v1911 = vadd.f32 %v1885, %v1907
    %s1912 = sld [smem:[#allocation2 + $0x1c]]
    %v1913 = vstv %s1912
    %v1914 = vmul.f32 %v1913, %v1886
    %v1915 = vmul.f32 %v1913, %v1887
    %v1916 = vmul.f32 %v1913, %v1889
    %v1917 = vmul.f32 %v1913, %v1890
    %1922 = vrot.lane.b32.xlu0 %v1914, 127
    %v1923 = vpop.permute.xlu0 %1922
    %1924 = vrot.lane.b32.xlu0 %v1915, 127
    %v1925 = vpop.permute.xlu0 %1924
    %1926 = vrot.lane.b32.xlu0 %v1916, 127
    %v1927 = vpop.permute.xlu0 %1926
    %1928 = vrot.lane.b32.xlu0 %v1917, 127
    %v1929 = vpop.permute.xlu0 %1928
    %v1934 = vadd.f32 %v1898, %v1923
    %v1935 = vadd.f32 %v1899, %v1925
    %v1936 = vadd.f32 %v1900, %v1927
    %v1937 = vadd.f32 %v1901, %v1929
    %s1938 = sld [smem:[#allocation5 + $0x1c]]
    %v1939 = vstv %s1938
    %v1940 = vmul.f32 %v1939, %v1886
    %v1941 = vmul.f32 %v1939, %v1887
    %v1942 = vmul.f32 %v1939, %v1889
    %v1943 = vmul.f32 %v1939, %v1890
    %1948 = vrot.lane.b32.xlu0 %v1940, 127
    %v1949 = vpop.permute.xlu0 %1948
    %1950 = vrot.lane.b32.xlu0 %v1941, 127
    %v1951 = vpop.permute.xlu0 %1950
    %1952 = vrot.lane.b32.xlu0 %v1942, 127
    %v1953 = vpop.permute.xlu0 %1952
    %1954 = vrot.lane.b32.xlu0 %v1943, 127
    %v1955 = vpop.permute.xlu0 %1954
    %v1960 = vadd.f32 %v1908, %v1949
    %v1961 = vadd.f32 %v1909, %v1951
    %v1962 = vadd.f32 %v1910, %v1953
    %v1963 = vadd.f32 %v1911, %v1955
    %s1964 = sld [smem:[#allocation2 + $0x1d]]
    %v1965 = vstv %s1964
    %v1966 = vmul.f32 %v1965, %v1886
    %v1967 = vmul.f32 %v1965, %v1887
    %v1968 = vmul.f32 %v1965, %v1889
    %v1969 = vmul.f32 %v1965, %v1890
    %1974 = vrot.lane.b32.xlu0 %v1966, 126
    %v1975 = vpop.permute.xlu0 %1974
    %1976 = vrot.lane.b32.xlu0 %v1967, 126
    %v1977 = vpop.permute.xlu0 %1976
    %1978 = vrot.lane.b32.xlu0 %v1968, 126
    %v1979 = vpop.permute.xlu0 %1978
    %1980 = vrot.lane.b32.xlu0 %v1969, 126
    %v1981 = vpop.permute.xlu0 %1980
    %v1986 = vadd.f32 %v1934, %v1975
    %v1987 = vadd.f32 %v1935, %v1977
    %v1988 = vadd.f32 %v1936, %v1979
    %v1989 = vadd.f32 %v1937, %v1981
    %s1990 = sld [smem:[#allocation5 + $0x1d]]
    %v1991 = vstv %s1990
    %v1992 = vmul.f32 %v1991, %v1886
    %v1993 = vmul.f32 %v1991, %v1887
    %v1994 = vmul.f32 %v1991, %v1889
    %v1995 = vmul.f32 %v1991, %v1890
    %2000 = vrot.lane.b32.xlu0 %v1992, 126
    %v2001 = vpop.permute.xlu0 %2000
    %2002 = vrot.lane.b32.xlu0 %v1993, 126
    %v2003 = vpop.permute.xlu0 %2002
    %2004 = vrot.lane.b32.xlu0 %v1994, 126
    %v2005 = vpop.permute.xlu0 %2004
    %2006 = vrot.lane.b32.xlu0 %v1995, 126
    %v2007 = vpop.permute.xlu0 %2006
    %v2012 = vadd.f32 %v1960, %v2001
    %v2013 = vadd.f32 %v1961, %v2003
    %v2014 = vadd.f32 %v1962, %v2005
    %v2015 = vadd.f32 %v1963, %v2007
    %s2016 = sld [smem:[#allocation2 + $0x1e]]
    %v2017 = vstv %s2016
    %v2018 = vmul.f32 %v2017, %v1886
    %v2019 = vmul.f32 %v2017, %v1887
    %v2020 = vmul.f32 %v2017, %v1888
    %v2021 = vmul.f32 %v2017, %v1889
    %v2022 = vmul.f32 %v2017, %v1890
    %v2023 = vmul.f32 %v2017, %v1891
    %v2030 = vrot.slane %v2018, 1
    %v2031 = vrot.slane %v2019, 1
    %v2032 = vsel %vm218, %v2030, %v2031
    %v2033 = vrot.slane %v2020, 1
    %v2034 = vsel %vm218, %v2031, %v2033
    %v2035 = vrot.slane %v2021, 1
    %v2036 = vrot.slane %v2022, 1
    %v2037 = vsel %vm218, %v2035, %v2036
    %v2038 = vrot.slane %v2023, 1
    %v2039 = vsel %vm218, %v2036, %v2038
    %v2044 = vadd.f32 %v1986, %v2032
    %v2045 = vadd.f32 %v1987, %v2034
    %v2046 = vadd.f32 %v1988, %v2037
    %v2047 = vadd.f32 %v1989, %v2039
    %s2048 = sld [smem:[#allocation5 + $0x1e]]
    %v2049 = vstv %s2048
    %v2050 = vmul.f32 %v2049, %v1886
    %v2051 = vmul.f32 %v2049, %v1887
    %v2052 = vmul.f32 %v2049, %v1888
    %v2053 = vmul.f32 %v2049, %v1889
    %v2054 = vmul.f32 %v2049, %v1890
    %v2055 = vmul.f32 %v2049, %v1891
    %v2062 = vrot.slane %v2050, 1
    %v2063 = vrot.slane %v2051, 1
    %v2064 = vsel %vm218, %v2062, %v2063
    %v2065 = vrot.slane %v2052, 1
    %v2066 = vsel %vm218, %v2063, %v2065
    %v2067 = vrot.slane %v2053, 1
    %v2068 = vrot.slane %v2054, 1
    %v2069 = vsel %vm218, %v2067, %v2068
    %v2070 = vrot.slane %v2055, 1
    %v2071 = vsel %vm218, %v2068, %v2070
    %v2076 = vadd.f32 %v2012, %v2064
    %v2077 = vadd.f32 %v2013, %v2066
    %v2078 = vadd.f32 %v2014, %v2069
    %v2079 = vadd.f32 %v2015, %v2071
    %s2080 = sld [smem:[#allocation2 + $0x1f]]
    %v2081 = vstv %s2080
    %v2082 = vmul.f32 %v2081, %v1886
    %v2083 = vmul.f32 %v2081, %v1887
    %v2084 = vmul.f32 %v2081, %v1888
    %v2085 = vmul.f32 %v2081, %v1889
    %v2086 = vmul.f32 %v2081, %v1890
    %v2087 = vmul.f32 %v2081, %v1891
    %v2094 = vrot.slane %v2082, 1
    %v2095 = vrot.slane %v2083, 1
    %v2096 = vsel %vm218, %v2094, %v2095
    %v2097 = vrot.slane %v2084, 1
    %v2098 = vsel %vm218, %v2095, %v2097
    %v2099 = vrot.slane %v2085, 1
    %v2100 = vrot.slane %v2086, 1
    %v2101 = vsel %vm218, %v2099, %v2100
    %v2102 = vrot.slane %v2087, 1
    %v2103 = vsel %vm218, %v2100, %v2102
    %2104 = vrot.lane.b32.xlu0 %v2096, 127
    %v2105 = vpop.permute.xlu0 %2104
    %2106 = vrot.lane.b32.xlu0 %v2098, 127
    %v2107 = vpop.permute.xlu0 %2106
    %2108 = vrot.lane.b32.xlu0 %v2101, 127
    %v2109 = vpop.permute.xlu0 %2108
    %2110 = vrot.lane.b32.xlu0 %v2103, 127
    %v2111 = vpop.permute.xlu0 %2110
    %v2116 = vadd.f32 %v2044, %v2105
    %v2117 = vadd.f32 %v2045, %v2107
    %v2118 = vadd.f32 %v2046, %v2109
    %v2119 = vadd.f32 %v2047, %v2111
    %s2120 = sld [smem:[#allocation5 + $0x1f]]
    %v2121 = vstv %s2120
    %v2122 = vmul.f32 %v2121, %v1886
    %v2123 = vmul.f32 %v2121, %v1887
    %v2124 = vmul.f32 %v2121, %v1888
    %v2125 = vmul.f32 %v2121, %v1889
    %v2126 = vmul.f32 %v2121, %v1890
    %v2127 = vmul.f32 %v2121, %v1891
    %v2134 = vrot.slane %v2122, 1
    %v2135 = vrot.slane %v2123, 1
    %v2136 = vsel %vm218, %v2134, %v2135
    %v2137 = vrot.slane %v2124, 1
    %v2138 = vsel %vm218, %v2135, %v2137
    %v2139 = vrot.slane %v2125, 1
    %v2140 = vrot.slane %v2126, 1
    %v2141 = vsel %vm218, %v2139, %v2140
    %v2142 = vrot.slane %v2127, 1
    %v2143 = vsel %vm218, %v2140, %v2142
    %2144 = vrot.lane.b32.xlu0 %v2136, 127
    %v2145 = vpop.permute.xlu0 %2144
    %2146 = vrot.lane.b32.xlu0 %v2138, 127
    %v2147 = vpop.permute.xlu0 %2146
    %2148 = vrot.lane.b32.xlu0 %v2141, 127
    %v2149 = vpop.permute.xlu0 %2148
    %2150 = vrot.lane.b32.xlu0 %v2143, 127
    %v2151 = vpop.permute.xlu0 %2150
    %v2156 = vadd.f32 %v2076, %v2145
    %v2157 = vadd.f32 %v2077, %v2147
    %v2158 = vadd.f32 %v2078, %v2149
    %v2159 = vadd.f32 %v2079, %v2151
    %s2160 = sld [smem:[#allocation2 + $0x20]]
    %v2161 = vstv %s2160
    %v2162 = vmul.f32 %v2161, %v1886
    %v2163 = vmul.f32 %v2161, %v1887
    %v2164 = vmul.f32 %v2161, %v1888
    %v2165 = vmul.f32 %v2161, %v1889
    %v2166 = vmul.f32 %v2161, %v1890
    %v2167 = vmul.f32 %v2161, %v1891
    %v2174 = vrot.slane %v2162, 1
    %v2175 = vrot.slane %v2163, 1
    %v2176 = vsel %vm218, %v2174, %v2175
    %v2177 = vrot.slane %v2164, 1
    %v2178 = vsel %vm218, %v2175, %v2177
    %v2179 = vrot.slane %v2165, 1
    %v2180 = vrot.slane %v2166, 1
    %v2181 = vsel %vm218, %v2179, %v2180
    %v2182 = vrot.slane %v2167, 1
    %v2183 = vsel %vm218, %v2180, %v2182
    %2184 = vrot.lane.b32.xlu0 %v2176, 126
    %v2185 = vpop.permute.xlu0 %2184
    %2186 = vrot.lane.b32.xlu0 %v2178, 126
    %v2187 = vpop.permute.xlu0 %2186
    %2188 = vrot.lane.b32.xlu0 %v2181, 126
    %v2189 = vpop.permute.xlu0 %2188
    %2190 = vrot.lane.b32.xlu0 %v2183, 126
    %v2191 = vpop.permute.xlu0 %2190
    %v2196 = vadd.f32 %v2116, %v2185
    %v2197 = vadd.f32 %v2117, %v2187
    %v2198 = vadd.f32 %v2118, %v2189
    %v2199 = vadd.f32 %v2119, %v2191
    %s2200 = sld [smem:[#allocation5 + $0x20]]
    %v2201 = vstv %s2200
    %v2202 = vmul.f32 %v2201, %v1886
    %v2203 = vmul.f32 %v2201, %v1887
    %v2204 = vmul.f32 %v2201, %v1888
    %v2205 = vmul.f32 %v2201, %v1889
    %v2206 = vmul.f32 %v2201, %v1890
    %v2207 = vmul.f32 %v2201, %v1891
    %v2214 = vrot.slane %v2202, 1
    %v2215 = vrot.slane %v2203, 1
    %v2216 = vsel %vm218, %v2214, %v2215
    %v2217 = vrot.slane %v2204, 1
    %v2218 = vsel %vm218, %v2215, %v2217
    %v2219 = vrot.slane %v2205, 1
    %v2220 = vrot.slane %v2206, 1
    %v2221 = vsel %vm218, %v2219, %v2220
    %v2222 = vrot.slane %v2207, 1
    %v2223 = vsel %vm218, %v2220, %v2222
    %2224 = vrot.lane.b32.xlu0 %v2216, 126
    %v2225 = vpop.permute.xlu0 %2224
    %2226 = vrot.lane.b32.xlu0 %v2218, 126
    %v2227 = vpop.permute.xlu0 %2226
    %2228 = vrot.lane.b32.xlu0 %v2221, 126
    %v2229 = vpop.permute.xlu0 %2228
    %2230 = vrot.lane.b32.xlu0 %v2223, 126
    %v2231 = vpop.permute.xlu0 %2230
    %v2236 = vadd.f32 %v2156, %v2225
    %v2237 = vadd.f32 %v2157, %v2227
    %v2238 = vadd.f32 %v2158, %v2229
    %v2239 = vadd.f32 %v2159, %v2231
    %s2240 = sld [smem:[#allocation2 + $0x21]]
    %v2241 = vstv %s2240
    %v2242 = vmul.f32 %v2241, %v1886
    %v2243 = vmul.f32 %v2241, %v1887
    %v2244 = vmul.f32 %v2241, %v1888
    %v2245 = vmul.f32 %v2241, %v1889
    %v2246 = vmul.f32 %v2241, %v1890
    %v2247 = vmul.f32 %v2241, %v1891
    %v2254 = vrot.slane %v2242, 2
    %v2255 = vrot.slane %v2243, 2
    %v2256 = vsel %vm443, %v2254, %v2255
    %v2257 = vrot.slane %v2244, 2
    %v2258 = vsel %vm443, %v2255, %v2257
    %v2259 = vrot.slane %v2245, 2
    %v2260 = vrot.slane %v2246, 2
    %v2261 = vsel %vm443, %v2259, %v2260
    %v2262 = vrot.slane %v2247, 2
    %v2263 = vsel %vm443, %v2260, %v2262
    %v2268 = vadd.f32 %v2196, %v2256
    %v2269 = vadd.f32 %v2197, %v2258
    %v2270 = vadd.f32 %v2198, %v2261
    %v2271 = vadd.f32 %v2199, %v2263
    %s2272 = sld [smem:[#allocation5 + $0x21]]
    %v2273 = vstv %s2272
    %v2274 = vmul.f32 %v2273, %v1886
    %v2275 = vmul.f32 %v2273, %v1887
    %v2276 = vmul.f32 %v2273, %v1888
    %v2277 = vmul.f32 %v2273, %v1889
    %v2278 = vmul.f32 %v2273, %v1890
    %v2279 = vmul.f32 %v2273, %v1891
    %v2286 = vrot.slane %v2274, 2
    %v2287 = vrot.slane %v2275, 2
    %v2288 = vsel %vm443, %v2286, %v2287
    %v2289 = vrot.slane %v2276, 2
    %v2290 = vsel %vm443, %v2287, %v2289
    %v2291 = vrot.slane %v2277, 2
    %v2292 = vrot.slane %v2278, 2
    %v2293 = vsel %vm443, %v2291, %v2292
    %v2294 = vrot.slane %v2279, 2
    %v2295 = vsel %vm443, %v2292, %v2294
    %v2300 = vadd.f32 %v2236, %v2288
    %v2301 = vadd.f32 %v2237, %v2290
    %v2302 = vadd.f32 %v2238, %v2293
    %v2303 = vadd.f32 %v2239, %v2295
    %s2304 = sld [smem:[#allocation2 + $0x22]]
    %v2305 = vstv %s2304
    %v2306 = vmul.f32 %v2305, %v1886
    %v2307 = vmul.f32 %v2305, %v1887
    %v2308 = vmul.f32 %v2305, %v1888
    %v2309 = vmul.f32 %v2305, %v1889
    %v2310 = vmul.f32 %v2305, %v1890
    %v2311 = vmul.f32 %v2305, %v1891
    %v2318 = vrot.slane %v2306, 2
    %v2319 = vrot.slane %v2307, 2
    %v2320 = vsel %vm443, %v2318, %v2319
    %v2321 = vrot.slane %v2308, 2
    %v2322 = vsel %vm443, %v2319, %v2321
    %v2323 = vrot.slane %v2309, 2
    %v2324 = vrot.slane %v2310, 2
    %v2325 = vsel %vm443, %v2323, %v2324
    %v2326 = vrot.slane %v2311, 2
    %v2327 = vsel %vm443, %v2324, %v2326
    %2328 = vrot.lane.b32.xlu0 %v2320, 127
    %v2329 = vpop.permute.xlu0 %2328
    %2330 = vrot.lane.b32.xlu0 %v2322, 127
    %v2331 = vpop.permute.xlu0 %2330
    %2332 = vrot.lane.b32.xlu0 %v2325, 127
    %v2333 = vpop.permute.xlu0 %2332
    %2334 = vrot.lane.b32.xlu0 %v2327, 127
    %v2335 = vpop.permute.xlu0 %2334
    %v2340 = vadd.f32 %v2268, %v2329
    %v2341 = vadd.f32 %v2269, %v2331
    %v2342 = vadd.f32 %v2270, %v2333
    %v2343 = vadd.f32 %v2271, %v2335
    %s2344 = sld [smem:[#allocation5 + $0x22]]
    %v2345 = vstv %s2344
    %v2346 = vmul.f32 %v2345, %v1886
    %v2347 = vmul.f32 %v2345, %v1887
    %v2348 = vmul.f32 %v2345, %v1888
    %v2349 = vmul.f32 %v2345, %v1889
    %v2350 = vmul.f32 %v2345, %v1890
    %v2351 = vmul.f32 %v2345, %v1891
    %v2358 = vrot.slane %v2346, 2
    %v2359 = vrot.slane %v2347, 2
    %v2360 = vsel %vm443, %v2358, %v2359
    %v2361 = vrot.slane %v2348, 2
    %v2362 = vsel %vm443, %v2359, %v2361
    %v2363 = vrot.slane %v2349, 2
    %v2364 = vrot.slane %v2350, 2
    %v2365 = vsel %vm443, %v2363, %v2364
    %v2366 = vrot.slane %v2351, 2
    %v2367 = vsel %vm443, %v2364, %v2366
    %2368 = vrot.lane.b32.xlu0 %v2360, 127
    %v2369 = vpop.permute.xlu0 %2368
    %2370 = vrot.lane.b32.xlu0 %v2362, 127
    %v2371 = vpop.permute.xlu0 %2370
    %2372 = vrot.lane.b32.xlu0 %v2365, 127
    %v2373 = vpop.permute.xlu0 %2372
    %2374 = vrot.lane.b32.xlu0 %v2367, 127
    %v2375 = vpop.permute.xlu0 %2374
    %v2380 = vadd.f32 %v2300, %v2369
    %v2381 = vadd.f32 %v2301, %v2371
    %v2382 = vadd.f32 %v2302, %v2373
    %v2383 = vadd.f32 %v2303, %v2375
    %s2384 = sld [smem:[#allocation2 + $0x23]]
    %v2385 = vstv %s2384
    %v2386 = vmul.f32 %v2385, %v1886
    %v2387 = vmul.f32 %v2385, %v1887
    %v2388 = vmul.f32 %v2385, %v1888
    %v2389 = vmul.f32 %v2385, %v1889
    %v2390 = vmul.f32 %v2385, %v1890
    %v2391 = vmul.f32 %v2385, %v1891
    %v2398 = vrot.slane %v2386, 2
    %v2399 = vrot.slane %v2387, 2
    %v2400 = vsel %vm443, %v2398, %v2399
    %v2401 = vrot.slane %v2388, 2
    %v2402 = vsel %vm443, %v2399, %v2401
    %v2403 = vrot.slane %v2389, 2
    %v2404 = vrot.slane %v2390, 2
    %v2405 = vsel %vm443, %v2403, %v2404
    %v2406 = vrot.slane %v2391, 2
    %v2407 = vsel %vm443, %v2404, %v2406
    %2408 = vrot.lane.b32.xlu0 %v2400, 126
    %v2409 = vpop.permute.xlu0 %2408
    %2410 = vrot.lane.b32.xlu0 %v2402, 126
    %v2411 = vpop.permute.xlu0 %2410
    %2412 = vrot.lane.b32.xlu0 %v2405, 126
    %v2413 = vpop.permute.xlu0 %2412
    %2414 = vrot.lane.b32.xlu0 %v2407, 126
    %v2415 = vpop.permute.xlu0 %2414
    %v2420 = vadd.f32 %v2340, %v2409
    %v2421 = vadd.f32 %v2341, %v2411
    %v2422 = vadd.f32 %v2342, %v2413
    %v2423 = vadd.f32 %v2343, %v2415
    %s2424 = sld [smem:[#allocation5 + $0x23]]
    %v2425 = vstv %s2424
    %v2426 = vmul.f32 %v2425, %v1886
    %v2427 = vmul.f32 %v2425, %v1887
    %v2428 = vmul.f32 %v2425, %v1888
    %v2429 = vmul.f32 %v2425, %v1889
    %v2430 = vmul.f32 %v2425, %v1890
    %v2431 = vmul.f32 %v2425, %v1891
    %v2438 = vrot.slane %v2426, 2
    %v2439 = vrot.slane %v2427, 2
    %v2440 = vsel %vm443, %v2438, %v2439
    %v2441 = vrot.slane %v2428, 2
    %v2442 = vsel %vm443, %v2439, %v2441
    %v2443 = vrot.slane %v2429, 2
    %v2444 = vrot.slane %v2430, 2
    %v2445 = vsel %vm443, %v2443, %v2444
    %v2446 = vrot.slane %v2431, 2
    %v2447 = vsel %vm443, %v2444, %v2446
    %2448 = vrot.lane.b32.xlu0 %v2440, 126
    %v2449 = vpop.permute.xlu0 %2448
    %2450 = vrot.lane.b32.xlu0 %v2442, 126
    %v2451 = vpop.permute.xlu0 %2450
    %2452 = vrot.lane.b32.xlu0 %v2445, 126
    %v2453 = vpop.permute.xlu0 %2452
    %2454 = vrot.lane.b32.xlu0 %v2447, 126
    %v2455 = vpop.permute.xlu0 %2454
    %v2460 = vadd.f32 %v2380, %v2449
    %v2461 = vadd.f32 %v2381, %v2451
    %v2462 = vadd.f32 %v2382, %v2453
    %v2463 = vadd.f32 %v2383, %v2455
    %s2464 = sld [smem:[#allocation7 + $0x1]]
    %v2465 = vstv %s2464
    %v2466 = vadd.f32 %v2420, %v2465
    %v2467 = vadd.f32 %v2421, %v2465
    %v2468 = vadd.f32 %v2422, %v2465
    %v2469 = vadd.f32 %v2423, %v2465
    %s2470 = sld [smem:[#allocation8 + $0x1]]
    %v2471 = vstv %s2470
    %v2472 = vadd.f32 %v2460, %v2471
    %v2473 = vadd.f32 %v2461, %v2471
    %v2474 = vadd.f32 %v2462, %v2471
    %v2475 = vadd.f32 %v2463, %v2471
    %s2476 = scalar_lea.vmem %s5, 16
    %v2477 = vld [vmem:[%s2476] sm:$0xff]
    %v2478 = vld [vmem:[%s2476 + $0x8] sm:$0xff]
    %v2479 = vld [vmem:[%s2476 + $0x20] sm:$0xff]
    %v2480 = vld [vmem:[%s2476 + $0x28] sm:$0xff]
    %v2481 = vsub.f32 %v2477, %v2466
    %v2482 = vsub.f32 %v2478, %v2467
    %v2483 = vsub.f32 %v2479, %v2468
    %v2484 = vsub.f32 %v2480, %v2469
    %v2485 = vsub.f32 0.0, %v2472
    %v2486 = vsub.f32 0.0, %v2473
    %v2487 = vsub.f32 0.0, %v2474
    %v2488 = vsub.f32 0.0, %v2475
    %v2489 = vmul.f32 %v2485, 1.442695
    %v2490 = vpow.pop %v2489
    %v2491 = vmul.f32 %v2486, 1.442695
    %v2492 = vpow.pop %v2491
    %v2493 = vmul.f32 %v2487, 1.442695
    %v2494 = vpow.pop %v2493
    %v2495 = vmul.f32 %v2488, 1.442695
    %v2496 = vpow.pop %v2495
    %v2497 = vmul.f32 %v2481, %v2490
    %v2498 = vmul.f32 %v2482, %v2492
    %v2499 = vmul.f32 %v2483, %v2494
    %v2500 = vmul.f32 %v2484, %v2496
    %s2501 = scalar_lea.vmem [#allocation10], 16
    %2502 = vst.msk [vmem:[%s2501] sm:$0xff] %vm1269, %v2497
    %2503 = vst.msk [vmem:[%s2501 + $0x8] sm:$0xff] %vm1269, %v2498
    %2504 = vst.msk [vmem:[%s2501 + $0x20] sm:$0xff] %vm1269, %v2499
    %2505 = vst.msk [vmem:[%s2501 + $0x28] sm:$0xff] %vm1269, %v2500
    %v2506 = vsel %vm1269, %v2472, 0.0
    %2507 = vadd.xlane.f32.xlu0 %v2506
    %v2508 = vpop.xlane.xlu0 %2507
    %v2509 = vsel %vm1269, %v2473, 0.0
    %2510 = vadd.xlane.f32.xlu0 %v2509
    %v2511 = vpop.xlane.xlu0 %2510
    %v2512 = vsel %vm1269, %v2474, 0.0
    %2513 = vadd.xlane.f32.xlu0 %v2512
    %v2514 = vpop.xlane.xlu0 %2513
    %v2515 = vsel %vm1269, %v2475, 0.0
    %2516 = vadd.xlane.f32.xlu0 %v2515
    %v2517 = vpop.xlane.xlu0 %2516
    %v2522 = vperm.slane %v2508, %v1291
    %v2523 = vperm.slane %v2511, %v1293
    %v2524 = vsel %vm1295, %v2523, %v2522
    %v2525 = vperm.slane %v2514, %v1291
    %v2526 = vperm.slane %v2517, %v1293
    %v2527 = vsel %vm1295, %v2526, %v2525
    %v2528 = vsel %vm1300, %v2527, %v2524
    %v2530 = vsel %vm1303, %v2528, 0.0
    %2531 = vadd.xlane.f32.xlu0 %v2530
    %v2532 = vpop.xlane.xlu0 %2531
    %v2533 = vsub.f32 %v1307, %v2532
    %vm2534 = vcmask 1024
    %2535 = vst.msk [vmem:[%s7] sm:$0x3] %vm2534, %v2533
    // Predicated region
    $region42: #{split_forward.1} parent=1 // pred_check
      _
    $region43: #{split_forward.1} parent=1 // pred_check_branch
      %2537 = sbr.rel (0) target = $region45
    $region44: #{split_forward.1} parent=1 // pred_region
      %2539 = vsyncadd [#allocation3], 0
      %s2540 = sshll.u32 [#allocation10], 4
      %s2541 = int_to_ptr.vmem [resolvable:$true] %s2540
      %s2542 = sshll.u32 %s6, 4
      %s2543 = int_to_ptr.hbm [resolvable:$true] %s2542
      %2548 = dma.vmem_to_hbm [thread:$0]  %s2541, 1024, %s2543, [#allocation3], 128, 128, 8
    $region45: #{split_forward.1} parent=1 // pred_fallthru
      _
    // Predicated region
    $region46: #{split_forward.1} parent=1 // pred_check
      _
    $region47: #{split_forward.1} parent=1 // pred_check_branch
      %2550 = sbr.rel (0) target = $region49
    $region48: #{split_forward.1} parent=1 // pred_region
      _
    $region49: #{split_forward.1} parent=1 // pred_fallthru
      _
    // Predicated region
    $region50: #{split_forward.1} parent=1 // pred_check
      _
    $region51: #{split_forward.1} parent=1 // pred_check_branch
      %2552 = sbr.rel (0) target = $region53
    $region52: #{split_forward.1} parent=1 // pred_region
      %2554 = dma.done [#allocation3], 1024
    $region53: #{split_forward.1} parent=1 // pred_fallthru
      _
    // Predicated region
    $region54: #{split_forward.1} parent=1 // pred_check
      _
    $region55: #{split_forward.1} parent=1 // pred_check_branch
      %2556 = sbr.rel (0) target = $region57
    $region56: #{split_forward.1} parent=1 // pred_region
      _
    $region57: #{split_forward.1} parent=1 // pred_fallthru
      _
    %2557 = vsyncpa [#allocation3], 1
    %2558 = vsyncpa [#allocation4], 1
    %2559 = vsyncpa [#allocation6], 1
    %2560 = vsyncpa [#allocation9], 1

</llo_original>
